<compile_context>
chip_gen: v7x
topology: tpu7x:2x2x1
jax: 0.10.0
libtpu: 0.0.40
codegen_flags: <defaults>
</compile_context>

<pallas_src>
import functools

import numpy as np

import jax
import jax.numpy as jnp
from jax import lax
from jax.experimental import pallas as pl
from jax.experimental.pallas import tpu as pltpu


def _cwconv_kernel(x_ref, w_ref, valid_ref, m_ref, mt_ref, y_ref, g_ref,
                   patch_ref, *, offsets, ch_stride, seg_len, n_valid, eps):
    Bt = x_ref.shape[0]
    Cr = ch_stride                     # sublane-aligned per-tap channel stride
    Le = seg_len                       # Ho * S flat spatial length per image
    Cout = m_ref.shape[0]

    # --- im2col: K*K flat lane-slices per image, stored as aligned 8-sublane
    #     blocks (Cr rows) into the shared patch scratch; no masks needed since
    #     the wrapper pre-padded the full W halo (taps never wrap rows). -------
    for b in range(Bt):
        base = b * Le
        for t, off in enumerate(offsets):
            patch_ref[t * Cr:(t + 1) * Cr, base:base + Le] = (
                x_ref[b, :, off:off + Le])

    # --- conv + ReLU as ONE fused MXU matmul over all Bt images --------------
    y = jnp.dot(w_ref[...], patch_ref[...],
                preferred_element_type=jnp.float32)          # (Cout, Bt*Le)
    y = jnp.maximum(y, 0.0)                                  # ReLU
    # TODO(synk): nn.Dropout not implemented (identity == p=0 / eval mode).

    # --- per-image group statistics (channels on sublanes, spatial on lanes) -
    valid = valid_ref[...]                                   # (1, Le)
    colb = lax.broadcasted_iota(jnp.int32, (Cout, Bt), 1)
    ch_sum = jnp.zeros((Cout, Bt), jnp.float32)
    ch_sq = jnp.zeros((Cout, Bt), jnp.float32)
    for b in range(Bt):
        ym = y[:, b * Le:(b + 1) * Le] * valid               # drop garbage cols
        ch_sum = jnp.where(colb == b,
                           jnp.sum(ym, axis=1, keepdims=True), ch_sum)
        ch_sq = jnp.where(colb == b,
                          jnp.sum(ym * ym, axis=1, keepdims=True), ch_sq)

    inv_n = 1.0 / n_valid
    gmean = jnp.dot(mt_ref[...], ch_sum,
                    preferred_element_type=jnp.float32) * inv_n     # (G, Bt)
    gsq = jnp.dot(mt_ref[...], ch_sq,
                  preferred_element_type=jnp.float32) * inv_n       # (G, Bt)
    var = jnp.maximum(gsq - gmean * gmean, 0.0)
    ginv = lax.rsqrt(var + eps)
    g_ref[0] = gmean                                          # (G, Bt) block

    # broadcast group stats back to channels (tiny one-hot matmuls, MXU idle)
    cmean = jnp.dot(m_ref[...], gmean, preferred_element_type=jnp.float32)
    cinv = jnp.dot(m_ref[...], ginv, preferred_element_type=jnp.float32)
    for b in range(Bt):
        y_ref[b] = ((y[:, b * Le:(b + 1) * Le] - cmean[:, b:b + 1])
                    * cinv[:, b:b + 1])


def make_cwconv(w_kkio, *, num_class, stride=1, padding=0, eps=1e-5,
                batch_tile=None):
    """Packs the weights/constants once and returns a jitted forward(x)."""
    assert stride == 1, "only stride=1 implemented in this kernel"
    K, K2, Cin, Cout = w_kkio.shape
    assert K == K2 and Cout % num_class == 0
    G = num_class
    Cr = ((Cin + 7) // 8) * 8          # channels padded to a sublane multiple

    # conv weight as (Cout, K*K*Cr); zero rows for the padded channels, ordered
    # tap-major (kh, kw) then channel, matching the patch scratch layout.
    w_pad = jnp.pad(w_kkio.astype(jnp.float32),
                    ((0, 0), (0, 0), (0, Cr - Cin), (0, 0)))
    w2 = jnp.transpose(w_pad, (3, 0, 1, 2)).reshape(Cout, K * K * Cr)

    # one-hot channel<->group membership matrices (tiny, baked constants)
    grp_of_ch = np.arange(Cout) // (Cout // G)
    m_np = (grp_of_ch[:, None] == np.arange(G)[None, :]).astype(np.float32)
    m = jnp.asarray(m_np)              # (Cout, G)
    mt = jnp.asarray(m_np.T)           # (G, Cout)

    @jax.jit
    def forward(x_nchw):
        B, Cin_x, H, W = x_nchw.shape
        assert Cin_x == Cin
        Ho = H + 2 * padding - K + 1
        Wo = W + 2 * padding - K + 1
        assert Ho > 0 and Wo > 0

        # W-halo flat geometry: row stride S holds the full padded width, so a
        # tap (kh, kw) is a constant flat offset kh*S + kw that never wraps.
        S = W + 2 * padding
        Hp = H + 2 * padding
        Le = Ho * S                    # flat output length per image (lane axis)
        Lx = (Hp + 1) * S              # +1 slack row absorbs the last-tap reads

        # batch tile: fold Bt images into the matmul N axis.  On v7x choose
        # batch_tile = B // 2 so the grid keeps >= 2 steps for both TCs.
        Bt = batch_tile if batch_tile is not None else (2 if B % 2 == 0 else 1)
        Bt = min(Bt, B)
        if B % Bt != 0:
            Bt = 1

        # single pad: channel pad to Cr, H halo + 1 slack row, full W halo.
        xp = jnp.pad(x_nchw.astype(jnp.float32),
                     ((0, 0), (0, Cr - Cin),
                      (padding, padding + 1), (padding, padding)))
        x_flat = xp.reshape(B, Cr, Lx)

        # shape-only constants (trace-time numpy -> compile-time constants)
        offsets = tuple(kh * S + kw for kh in range(K) for kw in range(K))
        j = np.arange(Le) % S
        valid = jnp.asarray((j < Wo).astype(np.float32)[None, :])   # (1, Le)
        n_valid = float(Ho * Wo * (Cout // G))

        kernel = functools.partial(_cwconv_kernel, offsets=offsets,
                                   ch_stride=Cr, seg_len=Le,
                                   n_valid=n_valid, eps=eps)

        y_ext, g3 = pl.pallas_call(
            kernel,
            out_shape=(jax.ShapeDtypeStruct((B, Cout, Le), jnp.float32),
                       jax.ShapeDtypeStruct((B // Bt, G, Bt), jnp.float32)),
            grid_spec=pltpu.PrefetchScalarGridSpec(
                num_scalar_prefetch=0,
                grid=(B // Bt,),
                in_specs=[
                    pl.BlockSpec((Bt, Cr, Lx), lambda i: (i, 0, 0)),
                    pl.BlockSpec((Cout, K * K * Cr), lambda i: (0, 0)),
                    pl.BlockSpec((1, Le), lambda i: (0, 0)),
                    pl.BlockSpec((Cout, G), lambda i: (0, 0)),
                    pl.BlockSpec((G, Cout), lambda i: (0, 0)),
                ],
                out_specs=[
                    pl.BlockSpec((Bt, Cout, Le), lambda i: (i, 0, 0)),
                    pl.BlockSpec((1, G, Bt), lambda i: (i, 0, 0)),
                ],
                scratch_shapes=[pltpu.VMEM((K * K * Cr, Bt * Le), jnp.float32)],
            ),
            compiler_params=pltpu.CompilerParams(
                dimension_semantics=("parallel",),
                vmem_limit_bytes=32 * 1024 * 1024),
        )(x_flat, w2, valid, m, mt)

        # drop the K-1 garbage columns per row (no-op when K == 1)
        y = y_ext.reshape(B, Cout, Ho, S)[..., :Wo]
        g = jnp.transpose(g3, (0, 2, 1)).reshape(B, G)
        return y, g

    return forward


def _ref_forward(x_nchw, w_kkio, *, num_class, stride=1, padding=0, eps=1e-5):
    """Pure-JAX reference matching the PyTorch forward (no_norm=False path)."""
    w_oihw = jnp.transpose(w_kkio, (3, 2, 0, 1))
    y = lax.conv_general_dilated(
        x_nchw, w_oihw, (stride, stride),
        [(padding, padding), (padding, padding)],
        dimension_numbers=("NCHW", "OIHW", "NCHW"))
    y = jnp.maximum(y, 0.0)
    B, C, H, W = y.shape
    g = y.reshape(B, num_class, -1).mean(axis=2)
    grp = y.reshape(B, num_class, C // num_class, H, W)
    mean = grp.mean(axis=(2, 3, 4), keepdims=True)
    var = grp.var(axis=(2, 3, 4), keepdims=True)
    yn = ((grp - mean) * lax.rsqrt(var + eps)).reshape(B, C, H, W)
    return yn, g


def _check(y, g, y_ref, g_ref, tag):
    assert jnp.allclose(y, y_ref, atol=2e-4, rtol=2e-4), \
        (tag, float(jnp.max(jnp.abs(y - y_ref))))
    assert jnp.allclose(g, g_ref, atol=2e-4, rtol=2e-4), \
        (tag, float(jnp.max(jnp.abs(g - g_ref))))


if __name__ == "__main__":
    key = jax.random.PRNGKey(0)
    kx, kw, kx2, kw2 = jax.random.split(key, 4)

    # CWConv(in_channels=4, out_channels=20, kernel_size=3, stride=1, padding=1,
    #        bias=False, num_class=10, dropout=0)
    B, Cin, H, W = 2, 4, 16, 16
    Cout, K, num_class = 20, 3, 10

    x = jax.random.normal(kx, (B, Cin, H, W), jnp.float32)
    # kaiming_normal_(mode='fan_out', nonlinearity='relu'): std = sqrt(2/(Cout*K*K))
    std = (2.0 / (Cout * K * K)) ** 0.5
    w = std * jax.random.normal(kw, (K, K, Cin, Cout), jnp.float32)

    # main config: padding=1, batch folded fully (1 grid step)
    fwd = make_cwconv(w, num_class=num_class, stride=1, padding=1)
    y, g = fwd(x)
    jax.block_until_ready((y, g))
    y_ref, g_ref = _ref_forward(x, w, num_class=num_class, stride=1, padding=1)
    _check(y, g, y_ref, g_ref, "p1_bt2")

    # same config, batch_tile=1 (2 grid steps; what you'd pick on v7x at B=2)
    fwd_bt1 = make_cwconv(w, num_class=num_class, stride=1, padding=1,
                          batch_tile=1)
    y1, g1 = fwd_bt1(x)
    jax.block_until_ready((y1, g1))
    _check(y1, g1, y_ref, g_ref, "p1_bt1")

    # padding=0 geometry (previously untested path)
    H2 = W2 = 10
    x2 = jax.random.normal(kx2, (B, Cin, H2, W2), jnp.float32)
    w2 = std * jax.random.normal(kw2, (K, K, Cin, Cout), jnp.float32)
    fwd_p0 = make_cwconv(w2, num_class=num_class, stride=1, padding=0)
    y2, g2 = fwd_p0(x2)
    jax.block_until_ready((y2, g2))
    y2_ref, g2_ref = _ref_forward(x2, w2, num_class=num_class, stride=1,
                                  padding=0)
    _check(y2, g2, y2_ref, g2_ref, "p0_bt2")

    print("KERNEL_OK")
</pallas_src>

<mosaic_0001>
module attributes {stable_mosaic.version = 11 : i64} {
  func.func @_cwconv_kernel(%arg0: i32, %arg1: memref<2x8x342xf32, #tpu.memory_space<vmem>>, %arg2: memref<20x72xf32, #tpu.memory_space<vmem>>, %arg3: memref<1x288xf32, #tpu.memory_space<vmem>>, %arg4: memref<20x10xf32, #tpu.memory_space<vmem>>, %arg5: memref<10x20xf32, #tpu.memory_space<vmem>>, %arg6: memref<2x20x288xf32, #tpu.memory_space<vmem>>, %arg7: memref<1x10x2xf32, #tpu.memory_space<vmem>>, %arg8: memref<72x576xf32, #tpu.memory_space<vmem>>) attributes {dimension_semantics = [#tpu.dimension_semantics<parallel>], iteration_bounds = array<i64: 1>, scalar_prefetch = 0 : i64, scratch_operands = 1 : i64, tpu.core_type = #tpu.core_type<tc>, window_params = [{transform_indices = @transform_0, window_bounds = array<i64: 2, 8, 342>}, {pipeline_mode = #tpu.pipeline_mode<synchronous>, transform_indices = @transform_1, window_bounds = array<i64: 20, 72>}, {pipeline_mode = #tpu.pipeline_mode<synchronous>, transform_indices = @transform_2, window_bounds = array<i64: 1, 288>}, {pipeline_mode = #tpu.pipeline_mode<synchronous>, transform_indices = @transform_3, window_bounds = array<i64: 20, 10>}, {pipeline_mode = #tpu.pipeline_mode<synchronous>, transform_indices = @transform_4, window_bounds = array<i64: 10, 20>}, {transform_indices = @transform_5, window_bounds = array<i64: 2, 20, 288>}, {transform_indices = @transform_6, window_bounds = array<i64: 1, 10, 2>}]} {
    %c0 = arith.constant 0 : index
    %c0_0 = arith.constant 0 : index
    %c0_1 = arith.constant 0 : index
    %0 = vector.load %arg1[%c0, %c0_0, %c0_1] : memref<2x8x342xf32, #tpu.memory_space<vmem>>, vector<1x8x288xf32>
    %1 = vector.shape_cast %0 : vector<1x8x288xf32> to vector<8x288xf32>
    %c0_2 = arith.constant 0 : index
    %c0_3 = arith.constant 0 : index
    %2 = vector.load %arg8[%c0_2, %c0_3] : memref<72x576xf32, #tpu.memory_space<vmem>>, vector<8x288xf32>
    tpu.vector_store %arg8[%c0_2, %c0_3], %1 {strides = array<i32>} : memref<72x576xf32, #tpu.memory_space<vmem>>, vector<8x288xf32>,
    %c0_4 = arith.constant 0 : index
    %c0_5 = arith.constant 0 : index
    %c1 = arith.constant 1 : index
    %3 = vector.load %arg1[%c0_4, %c0_5, %c1] : memref<2x8x342xf32, #tpu.memory_space<vmem>>, vector<1x8x288xf32>
    %4 = vector.shape_cast %3 : vector<1x8x288xf32> to vector<8x288xf32>
    %c8 = arith.constant 8 : index
    %c0_6 = arith.constant 0 : index
    %5 = vector.load %arg8[%c8, %c0_6] : memref<72x576xf32, #tpu.memory_space<vmem>>, vector<8x288xf32>
    tpu.vector_store %arg8[%c8, %c0_6], %4 {strides = array<i32>} : memref<72x576xf32, #tpu.memory_space<vmem>>, vector<8x288xf32>,
    %c0_7 = arith.constant 0 : index
    %c0_8 = arith.constant 0 : index
    %c2 = arith.constant 2 : index
    %6 = vector.load %arg1[%c0_7, %c0_8, %c2] : memref<2x8x342xf32, #tpu.memory_space<vmem>>, vector<1x8x288xf32>
    %7 = vector.shape_cast %6 : vector<1x8x288xf32> to vector<8x288xf32>
    %c16 = arith.constant 16 : index
    %c0_9 = arith.constant 0 : index
    %8 = vector.load %arg8[%c16, %c0_9] : memref<72x576xf32, #tpu.memory_space<vmem>>, vector<8x288xf32>
    tpu.vector_store %arg8[%c16, %c0_9], %7 {strides = array<i32>} : memref<72x576xf32, #tpu.memory_space<vmem>>, vector<8x288xf32>,
    %c0_10 = arith.constant 0 : index
    %c0_11 = arith.constant 0 : index
    %c18 = arith.constant 18 : index
    %9 = vector.load %arg1[%c0_10, %c0_11, %c18] : memref<2x8x342xf32, #tpu.memory_space<vmem>>, vector<1x8x288xf32>
    %10 = vector.shape_cast %9 : vector<1x8x288xf32> to vector<8x288xf32>
    %c24 = arith.constant 24 : index
    %c0_12 = arith.constant 0 : index
    %11 = vector.load %arg8[%c24, %c0_12] : memref<72x576xf32, #tpu.memory_space<vmem>>, vector<8x288xf32>
    tpu.vector_store %arg8[%c24, %c0_12], %10 {strides = array<i32>} : memref<72x576xf32, #tpu.memory_space<vmem>>, vector<8x288xf32>,
    %c0_13 = arith.constant 0 : index
    %c0_14 = arith.constant 0 : index
    %c19 = arith.constant 19 : index
    %12 = vector.load %arg1[%c0_13, %c0_14, %c19] : memref<2x8x342xf32, #tpu.memory_space<vmem>>, vector<1x8x288xf32>
    %13 = vector.shape_cast %12 : vector<1x8x288xf32> to vector<8x288xf32>
    %c32 = arith.constant 32 : index
    %c0_15 = arith.constant 0 : index
    %14 = vector.load %arg8[%c32, %c0_15] : memref<72x576xf32, #tpu.memory_space<vmem>>, vector<8x288xf32>
    tpu.vector_store %arg8[%c32, %c0_15], %13 {strides = array<i32>} : memref<72x576xf32, #tpu.memory_space<vmem>>, vector<8x288xf32>,
    %c0_16 = arith.constant 0 : index
    %c0_17 = arith.constant 0 : index
    %c20 = arith.constant 20 : index
    %15 = vector.load %arg1[%c0_16, %c0_17, %c20] : memref<2x8x342xf32, #tpu.memory_space<vmem>>, vector<1x8x288xf32>
    %16 = vector.shape_cast %15 : vector<1x8x288xf32> to vector<8x288xf32>
    %c40 = arith.constant 40 : index
    %c0_18 = arith.constant 0 : index
    %17 = vector.load %arg8[%c40, %c0_18] : memref<72x576xf32, #tpu.memory_space<vmem>>, vector<8x288xf32>
    tpu.vector_store %arg8[%c40, %c0_18], %16 {strides = array<i32>} : memref<72x576xf32, #tpu.memory_space<vmem>>, vector<8x288xf32>,
    %c0_19 = arith.constant 0 : index
    %c0_20 = arith.constant 0 : index
    %c36 = arith.constant 36 : index
    %18 = vector.load %arg1[%c0_19, %c0_20, %c36] : memref<2x8x342xf32, #tpu.memory_space<vmem>>, vector<1x8x288xf32>
    %19 = vector.shape_cast %18 : vector<1x8x288xf32> to vector<8x288xf32>
    %c48 = arith.constant 48 : index
    %c0_21 = arith.constant 0 : index
    %20 = vector.load %arg8[%c48, %c0_21] : memref<72x576xf32, #tpu.memory_space<vmem>>, vector<8x288xf32>
    tpu.vector_store %arg8[%c48, %c0_21], %19 {strides = array<i32>} : memref<72x576xf32, #tpu.memory_space<vmem>>, vector<8x288xf32>,
    %c0_22 = arith.constant 0 : index
    %c0_23 = arith.constant 0 : index
    %c37 = arith.constant 37 : index
    %21 = vector.load %arg1[%c0_22, %c0_23, %c37] : memref<2x8x342xf32, #tpu.memory_space<vmem>>, vector<1x8x288xf32>
    %22 = vector.shape_cast %21 : vector<1x8x288xf32> to vector<8x288xf32>
    %c56 = arith.constant 56 : index
    %c0_24 = arith.constant 0 : index
    %23 = vector.load %arg8[%c56, %c0_24] : memref<72x576xf32, #tpu.memory_space<vmem>>, vector<8x288xf32>
    tpu.vector_store %arg8[%c56, %c0_24], %22 {strides = array<i32>} : memref<72x576xf32, #tpu.memory_space<vmem>>, vector<8x288xf32>,
    %c0_25 = arith.constant 0 : index
    %c0_26 = arith.constant 0 : index
    %c38 = arith.constant 38 : index
    %24 = vector.load %arg1[%c0_25, %c0_26, %c38] : memref<2x8x342xf32, #tpu.memory_space<vmem>>, vector<1x8x288xf32>
    %25 = vector.shape_cast %24 : vector<1x8x288xf32> to vector<8x288xf32>
    %c64 = arith.constant 64 : index
    %c0_27 = arith.constant 0 : index
    %26 = vector.load %arg8[%c64, %c0_27] : memref<72x576xf32, #tpu.memory_space<vmem>>, vector<8x288xf32>
    tpu.vector_store %arg8[%c64, %c0_27], %25 {strides = array<i32>} : memref<72x576xf32, #tpu.memory_space<vmem>>, vector<8x288xf32>,
    %c1_28 = arith.constant 1 : index
    %c0_29 = arith.constant 0 : index
    %c0_30 = arith.constant 0 : index
    %27 = vector.load %arg1[%c1_28, %c0_29, %c0_30] : memref<2x8x342xf32, #tpu.memory_space<vmem>>, vector<1x8x288xf32>
    %28 = vector.shape_cast %27 : vector<1x8x288xf32> to vector<8x288xf32>
    %c0_31 = arith.constant 0 : index
    %c288 = arith.constant 288 : index
    %29 = vector.load %arg8[%c0_31, %c288] : memref<72x576xf32, #tpu.memory_space<vmem>>, vector<8x288xf32>
    tpu.vector_store %arg8[%c0_31, %c288], %28 {strides = array<i32>} : memref<72x576xf32, #tpu.memory_space<vmem>>, vector<8x288xf32>,
    %c1_32 = arith.constant 1 : index
    %c0_33 = arith.constant 0 : index
    %c1_34 = arith.constant 1 : index
    %30 = vector.load %arg1[%c1_32, %c0_33, %c1_34] : memref<2x8x342xf32, #tpu.memory_space<vmem>>, vector<1x8x288xf32>
    %31 = vector.shape_cast %30 : vector<1x8x288xf32> to vector<8x288xf32>
    %c8_35 = arith.constant 8 : index
    %c288_36 = arith.constant 288 : index
    %32 = vector.load %arg8[%c8_35, %c288_36] : memref<72x576xf32, #tpu.memory_space<vmem>>, vector<8x288xf32>
    tpu.vector_store %arg8[%c8_35, %c288_36], %31 {strides = array<i32>} : memref<72x576xf32, #tpu.memory_space<vmem>>, vector<8x288xf32>,
    %c1_37 = arith.constant 1 : index
    %c0_38 = arith.constant 0 : index
    %c2_39 = arith.constant 2 : index
    %33 = vector.load %arg1[%c1_37, %c0_38, %c2_39] : memref<2x8x342xf32, #tpu.memory_space<vmem>>, vector<1x8x288xf32>
    %34 = vector.shape_cast %33 : vector<1x8x288xf32> to vector<8x288xf32>
    %c16_40 = arith.constant 16 : index
    %c288_41 = arith.constant 288 : index
    %35 = vector.load %arg8[%c16_40, %c288_41] : memref<72x576xf32, #tpu.memory_space<vmem>>, vector<8x288xf32>
    tpu.vector_store %arg8[%c16_40, %c288_41], %34 {strides = array<i32>} : memref<72x576xf32, #tpu.memory_space<vmem>>, vector<8x288xf32>,
    %c1_42 = arith.constant 1 : index
    %c0_43 = arith.constant 0 : index
    %c18_44 = arith.constant 18 : index
    %36 = vector.load %arg1[%c1_42, %c0_43, %c18_44] : memref<2x8x342xf32, #tpu.memory_space<vmem>>, vector<1x8x288xf32>
    %37 = vector.shape_cast %36 : vector<1x8x288xf32> to vector<8x288xf32>
    %c24_45 = arith.constant 24 : index
    %c288_46 = arith.constant 288 : index
    %38 = vector.load %arg8[%c24_45, %c288_46] : memref<72x576xf32, #tpu.memory_space<vmem>>, vector<8x288xf32>
    tpu.vector_store %arg8[%c24_45, %c288_46], %37 {strides = array<i32>} : memref<72x576xf32, #tpu.memory_space<vmem>>, vector<8x288xf32>,
    %c1_47 = arith.constant 1 : index
    %c0_48 = arith.constant 0 : index
    %c19_49 = arith.constant 19 : index
    %39 = vector.load %arg1[%c1_47, %c0_48, %c19_49] : memref<2x8x342xf32, #tpu.memory_space<vmem>>, vector<1x8x288xf32>
    %40 = vector.shape_cast %39 : vector<1x8x288xf32> to vector<8x288xf32>
    %c32_50 = arith.constant 32 : index
    %c288_51 = arith.constant 288 : index
    %41 = vector.load %arg8[%c32_50, %c288_51] : memref<72x576xf32, #tpu.memory_space<vmem>>, vector<8x288xf32>
    tpu.vector_store %arg8[%c32_50, %c288_51], %40 {strides = array<i32>} : memref<72x576xf32, #tpu.memory_space<vmem>>, vector<8x288xf32>,
    %c1_52 = arith.constant 1 : index
    %c0_53 = arith.constant 0 : index
    %c20_54 = arith.constant 20 : index
    %42 = vector.load %arg1[%c1_52, %c0_53, %c20_54] : memref<2x8x342xf32, #tpu.memory_space<vmem>>, vector<1x8x288xf32>
    %43 = vector.shape_cast %42 : vector<1x8x288xf32> to vector<8x288xf32>
    %c40_55 = arith.constant 40 : index
    %c288_56 = arith.constant 288 : index
    %44 = vector.load %arg8[%c40_55, %c288_56] : memref<72x576xf32, #tpu.memory_space<vmem>>, vector<8x288xf32>
    tpu.vector_store %arg8[%c40_55, %c288_56], %43 {strides = array<i32>} : memref<72x576xf32, #tpu.memory_space<vmem>>, vector<8x288xf32>,
    %c1_57 = arith.constant 1 : index
    %c0_58 = arith.constant 0 : index
    %c36_59 = arith.constant 36 : index
    %45 = vector.load %arg1[%c1_57, %c0_58, %c36_59] : memref<2x8x342xf32, #tpu.memory_space<vmem>>, vector<1x8x288xf32>
    %46 = vector.shape_cast %45 : vector<1x8x288xf32> to vector<8x288xf32>
    %c48_60 = arith.constant 48 : index
    %c288_61 = arith.constant 288 : index
    %47 = vector.load %arg8[%c48_60, %c288_61] : memref<72x576xf32, #tpu.memory_space<vmem>>, vector<8x288xf32>
    tpu.vector_store %arg8[%c48_60, %c288_61], %46 {strides = array<i32>} : memref<72x576xf32, #tpu.memory_space<vmem>>, vector<8x288xf32>,
    %c1_62 = arith.constant 1 : index
    %c0_63 = arith.constant 0 : index
    %c37_64 = arith.constant 37 : index
    %48 = vector.load %arg1[%c1_62, %c0_63, %c37_64] : memref<2x8x342xf32, #tpu.memory_space<vmem>>, vector<1x8x288xf32>
    %49 = vector.shape_cast %48 : vector<1x8x288xf32> to vector<8x288xf32>
    %c56_65 = arith.constant 56 : index
    %c288_66 = arith.constant 288 : index
    %50 = vector.load %arg8[%c56_65, %c288_66] : memref<72x576xf32, #tpu.memory_space<vmem>>, vector<8x288xf32>
    tpu.vector_store %arg8[%c56_65, %c288_66], %49 {strides = array<i32>} : memref<72x576xf32, #tpu.memory_space<vmem>>, vector<8x288xf32>,
    %c1_67 = arith.constant 1 : index
    %c0_68 = arith.constant 0 : index
    %c38_69 = arith.constant 38 : index
    %51 = vector.load %arg1[%c1_67, %c0_68, %c38_69] : memref<2x8x342xf32, #tpu.memory_space<vmem>>, vector<1x8x288xf32>
    %52 = vector.shape_cast %51 : vector<1x8x288xf32> to vector<8x288xf32>
    %c64_70 = arith.constant 64 : index
    %c288_71 = arith.constant 288 : index
    %53 = vector.load %arg8[%c64_70, %c288_71] : memref<72x576xf32, #tpu.memory_space<vmem>>, vector<8x288xf32>
    tpu.vector_store %arg8[%c64_70, %c288_71], %52 {strides = array<i32>} : memref<72x576xf32, #tpu.memory_space<vmem>>, vector<8x288xf32>,
    %c0_72 = arith.constant 0 : index
    %c0_73 = arith.constant 0 : index
    %54 = vector.load %arg2[%c0_72, %c0_73] : memref<20x72xf32, #tpu.memory_space<vmem>>, vector<20x72xf32>
    %c0_74 = arith.constant 0 : index
    %c0_75 = arith.constant 0 : index
    %55 = vector.load %arg8[%c0_74, %c0_75] : memref<72x576xf32, #tpu.memory_space<vmem>>, vector<72x576xf32>
    %cst = arith.constant dense<0.000000e+00> : vector<20x576xf32>
    %56 = tpu.matmul %54, %55, %cst {dimension_numbers = #tpu.dot_dimension_numbers<[1], [0], [0], [1], [0, 0, 1, 1], [], []>} : vector<20x72xf32>, vector<72x576xf32>, vector<20x576xf32> -> vector<20x576xf32>
    %cst_76 = arith.constant 0.000000e+00 : f32
    %57 = vector.broadcast %cst_76 : f32 to vector<20x576xf32>
    %58 = arith.maximumf %56, %57 : vector<20x576xf32>
    %c0_77 = arith.constant 0 : index
    %c0_78 = arith.constant 0 : index
    %59 = vector.load %arg3[%c0_77, %c0_78] : memref<1x288xf32, #tpu.memory_space<vmem>>, vector<1x288xf32>
    %60 = tpu.iota {dimensions = array<i32: 1>} : vector<20x2xi32>
    %cst_79 = arith.constant 0.000000e+00 : f32
    %61 = vector.broadcast %cst_79 : f32 to vector<20x2xf32>
    %cst_80 = arith.constant 0.000000e+00 : f32
    %62 = vector.broadcast %cst_80 : f32 to vector<20x2xf32>
    %63 = vector.extract_strided_slice %58 {offsets = [0, 0], sizes = [20, 288], strides = [1, 1]} : vector<20x576xf32> to vector<20x288xf32>
    %64 = vector.broadcast %59 : vector<1x288xf32> to vector<20x288xf32>
    %65 = arith.mulf %63, %64 : vector<20x288xf32>
    %c0_i32 = arith.constant 0 : i32
    %66 = vector.broadcast %c0_i32 : i32 to vector<20x2xi32>
    %67 = arith.cmpi eq, %60, %66 : vector<20x2xi32>
    %cst_81 = arith.constant dense<0.000000e+00> : vector<20xf32>
    %68 = vector.multi_reduction <add>, %65, %cst_81 [1] : vector<20x288xf32> to vector<20xf32>
    %69 = vector.shape_cast %68 : vector<20xf32> to vector<20x1xf32>
    %70 = vector.shape_cast %69 : vector<20x1xf32> to vector<20x1xf32>
    %71 = vector.broadcast %70 : vector<20x1xf32> to vector<20x2xf32>
    %72 = arith.select %67, %71, %61 : vector<20x2xi1>, vector<20x2xf32>
    %c0_i32_82 = arith.constant 0 : i32
    %73 = vector.broadcast %c0_i32_82 : i32 to vector<20x2xi32>
    %74 = arith.cmpi eq, %60, %73 : vector<20x2xi32>
    %75 = arith.mulf %65, %65 : vector<20x288xf32>
    %cst_83 = arith.constant dense<0.000000e+00> : vector<20xf32>
    %76 = vector.multi_reduction <add>, %75, %cst_83 [1] : vector<20x288xf32> to vector<20xf32>
    %77 = vector.shape_cast %76 : vector<20xf32> to vector<20x1xf32>
    %78 = vector.shape_cast %77 : vector<20x1xf32> to vector<20x1xf32>
    %79 = vector.broadcast %78 : vector<20x1xf32> to vector<20x2xf32>
    %80 = arith.select %74, %79, %62 : vector<20x2xi1>, vector<20x2xf32>
    %81 = vector.extract_strided_slice %58 {offsets = [0, 288], sizes = [20, 288], strides = [1, 1]} : vector<20x576xf32> to vector<20x288xf32>
    %82 = vector.broadcast %59 : vector<1x288xf32> to vector<20x288xf32>
    %83 = arith.mulf %81, %82 : vector<20x288xf32>
    %c1_i32 = arith.constant 1 : i32
    %84 = vector.broadcast %c1_i32 : i32 to vector<20x2xi32>
    %85 = arith.cmpi eq, %60, %84 : vector<20x2xi32>
    %cst_84 = arith.constant dense<0.000000e+00> : vector<20xf32>
    %86 = vector.multi_reduction <add>, %83, %cst_84 [1] : vector<20x288xf32> to vector<20xf32>
    %87 = vector.shape_cast %86 : vector<20xf32> to vector<20x1xf32>
    %88 = vector.shape_cast %87 : vector<20x1xf32> to vector<20x1xf32>
    %89 = vector.broadcast %88 : vector<20x1xf32> to vector<20x2xf32>
    %90 = arith.select %85, %89, %72 : vector<20x2xi1>, vector<20x2xf32>
    %c1_i32_85 = arith.constant 1 : i32
    %91 = vector.broadcast %c1_i32_85 : i32 to vector<20x2xi32>
    %92 = arith.cmpi eq, %60, %91 : vector<20x2xi32>
    %93 = arith.mulf %83, %83 : vector<20x288xf32>
    %cst_86 = arith.constant dense<0.000000e+00> : vector<20xf32>
    %94 = vector.multi_reduction <add>, %93, %cst_86 [1] : vector<20x288xf32> to vector<20xf32>
    %95 = vector.shape_cast %94 : vector<20xf32> to vector<20x1xf32>
    %96 = vector.shape_cast %95 : vector<20x1xf32> to vector<20x1xf32>
    %97 = vector.broadcast %96 : vector<20x1xf32> to vector<20x2xf32>
    %98 = arith.select %92, %97, %80 : vector<20x2xi1>, vector<20x2xf32>
    %c0_87 = arith.constant 0 : index
    %c0_88 = arith.constant 0 : index
    %99 = vector.load %arg5[%c0_87, %c0_88] : memref<10x20xf32, #tpu.memory_space<vmem>>, vector<10x20xf32>
    %cst_89 = arith.constant dense<0.000000e+00> : vector<10x2xf32>
    %100 = tpu.matmul %99, %90, %cst_89 {dimension_numbers = #tpu.dot_dimension_numbers<[1], [0], [0], [1], [0, 0, 1, 1], [], []>} : vector<10x20xf32>, vector<20x2xf32>, vector<10x2xf32> -> vector<10x2xf32>
    %cst_90 = arith.constant 0.001953125 : f32
    %101 = vector.broadcast %cst_90 : f32 to vector<10x2xf32>
    %102 = arith.mulf %100, %101 : vector<10x2xf32>
    %c0_91 = arith.constant 0 : index
    %c0_92 = arith.constant 0 : index
    %103 = vector.load %arg5[%c0_91, %c0_92] : memref<10x20xf32, #tpu.memory_space<vmem>>, vector<10x20xf32>
    %cst_93 = arith.constant dense<0.000000e+00> : vector<10x2xf32>
    %104 = tpu.matmul %103, %98, %cst_93 {dimension_numbers = #tpu.dot_dimension_numbers<[1], [0], [0], [1], [0, 0, 1, 1], [], []>} : vector<10x20xf32>, vector<20x2xf32>, vector<10x2xf32> -> vector<10x2xf32>
    %cst_94 = arith.constant 0.001953125 : f32
    %105 = vector.broadcast %cst_94 : f32 to vector<10x2xf32>
    %106 = arith.mulf %104, %105 : vector<10x2xf32>
    %107 = arith.mulf %102, %102 : vector<10x2xf32>
    %108 = arith.subf %106, %107 : vector<10x2xf32>
    %cst_95 = arith.constant 0.000000e+00 : f32
    %109 = vector.broadcast %cst_95 : f32 to vector<10x2xf32>
    %110 = arith.maximumf %108, %109 : vector<10x2xf32>
    %cst_96 = arith.constant 9.99999974E-6 : f32
    %111 = vector.broadcast %cst_96 : f32 to vector<10x2xf32>
    %112 = arith.addf %110, %111 : vector<10x2xf32>
    %113 = math.rsqrt %112 : vector<10x2xf32>
    %c0_97 = arith.constant 0 : index
    %c0_98 = arith.constant 0 : index
    %c0_99 = arith.constant 0 : index
    %114 = vector.load %arg7[%c0_97, %c0_98, %c0_99] : memref<1x10x2xf32, #tpu.memory_space<vmem>>, vector<1x10x2xf32>
    %115 = vector.shape_cast %114 : vector<1x10x2xf32> to vector<10x2xf32>
    %116 = vector.shape_cast %102 : vector<10x2xf32> to vector<1x10x2xf32>
    tpu.vector_store %arg7[%c0_97, %c0_98, %c0_99], %116 {strides = array<i32>} : memref<1x10x2xf32, #tpu.memory_space<vmem>>, vector<1x10x2xf32>,
    %c0_100 = arith.constant 0 : index
    %c0_101 = arith.constant 0 : index
    %117 = vector.load %arg4[%c0_100, %c0_101] : memref<20x10xf32, #tpu.memory_space<vmem>>, vector<20x10xf32>
    %cst_102 = arith.constant dense<0.000000e+00> : vector<20x2xf32>
    %118 = tpu.matmul %117, %102, %cst_102 {dimension_numbers = #tpu.dot_dimension_numbers<[1], [0], [0], [1], [0, 0, 1, 1], [], []>} : vector<20x10xf32>, vector<10x2xf32>, vector<20x2xf32> -> vector<20x2xf32>
    %c0_103 = arith.constant 0 : index
    %c0_104 = arith.constant 0 : index
    %119 = vector.load %arg4[%c0_103, %c0_104] : memref<20x10xf32, #tpu.memory_space<vmem>>, vector<20x10xf32>
    %cst_105 = arith.constant dense<0.000000e+00> : vector<20x2xf32>
    %120 = tpu.matmul %119, %113, %cst_105 {dimension_numbers = #tpu.dot_dimension_numbers<[1], [0], [0], [1], [0, 0, 1, 1], [], []>} : vector<20x10xf32>, vector<10x2xf32>, vector<20x2xf32> -> vector<20x2xf32>
    %121 = vector.extract_strided_slice %58 {offsets = [0, 0], sizes = [20, 288], strides = [1, 1]} : vector<20x576xf32> to vector<20x288xf32>
    %122 = vector.extract_strided_slice %118 {offsets = [0, 0], sizes = [20, 1], strides = [1, 1]} : vector<20x2xf32> to vector<20x1xf32>
    %123 = vector.broadcast %122 : vector<20x1xf32> to vector<20x288xf32>
    %124 = arith.subf %121, %123 : vector<20x288xf32>
    %125 = vector.extract_strided_slice %120 {offsets = [0, 0], sizes = [20, 1], strides = [1, 1]} : vector<20x2xf32> to vector<20x1xf32>
    %126 = vector.broadcast %125 : vector<20x1xf32> to vector<20x288xf32>
    %127 = arith.mulf %124, %126 : vector<20x288xf32>
    %c0_106 = arith.constant 0 : index
    %c0_107 = arith.constant 0 : index
    %c0_108 = arith.constant 0 : index
    %128 = vector.load %arg6[%c0_106, %c0_107, %c0_108] : memref<2x20x288xf32, #tpu.memory_space<vmem>>, vector<1x20x288xf32>
    %129 = vector.shape_cast %128 : vector<1x20x288xf32> to vector<20x288xf32>
    %130 = vector.shape_cast %127 : vector<20x288xf32> to vector<1x20x288xf32>
    tpu.vector_store %arg6[%c0_106, %c0_107, %c0_108], %130 {strides = array<i32>} : memref<2x20x288xf32, #tpu.memory_space<vmem>>, vector<1x20x288xf32>,
    %131 = vector.extract_strided_slice %58 {offsets = [0, 288], sizes = [20, 288], strides = [1, 1]} : vector<20x576xf32> to vector<20x288xf32>
    %132 = vector.extract_strided_slice %118 {offsets = [0, 1], sizes = [20, 1], strides = [1, 1]} : vector<20x2xf32> to vector<20x1xf32>
    %133 = vector.broadcast %132 : vector<20x1xf32> to vector<20x288xf32>
    %134 = arith.subf %131, %133 : vector<20x288xf32>
    %135 = vector.extract_strided_slice %120 {offsets = [0, 1], sizes = [20, 1], strides = [1, 1]} : vector<20x2xf32> to vector<20x1xf32>
    %136 = vector.broadcast %135 : vector<20x1xf32> to vector<20x288xf32>
    %137 = arith.mulf %134, %136 : vector<20x288xf32>
    %c1_109 = arith.constant 1 : index
    %c0_110 = arith.constant 0 : index
    %c0_111 = arith.constant 0 : index
    %138 = vector.load %arg6[%c1_109, %c0_110, %c0_111] : memref<2x20x288xf32, #tpu.memory_space<vmem>>, vector<1x20x288xf32>
    %139 = vector.shape_cast %138 : vector<1x20x288xf32> to vector<20x288xf32>
    %140 = vector.shape_cast %137 : vector<20x288xf32> to vector<1x20x288xf32>
    tpu.vector_store %arg6[%c1_109, %c0_110, %c0_111], %140 {strides = array<i32>} : memref<2x20x288xf32, #tpu.memory_space<vmem>>, vector<1x20x288xf32>,
    return
  }
  func.func @transform_0(%arg0: i32) -> (i32, i32, i32) {
    %c0_i32 = arith.constant 0 : i32
    %c0_i32_0 = arith.constant 0 : i32
    %c0_i32_1 = arith.constant 0 : i32
    return %arg0, %c0_i32, %c0_i32_0 : i32, i32, i32
  }
  func.func @transform_1(%arg0: i32) -> (i32, i32) {
    %c0_i32 = arith.constant 0 : i32
    %c0_i32_0 = arith.constant 0 : i32
    %c0_i32_1 = arith.constant 0 : i32
    return %c0_i32, %c0_i32_0 : i32, i32
  }
  func.func @transform_2(%arg0: i32) -> (i32, i32) {
    %c0_i32 = arith.constant 0 : i32
    %c0_i32_0 = arith.constant 0 : i32
    %c0_i32_1 = arith.constant 0 : i32
    return %c0_i32, %c0_i32_0 : i32, i32
  }
  func.func @transform_3(%arg0: i32) -> (i32, i32) {
    %c0_i32 = arith.constant 0 : i32
    %c0_i32_0 = arith.constant 0 : i32
    %c0_i32_1 = arith.constant 0 : i32
    return %c0_i32, %c0_i32_0 : i32, i32
  }
  func.func @transform_4(%arg0: i32) -> (i32, i32) {
    %c0_i32 = arith.constant 0 : i32
    %c0_i32_0 = arith.constant 0 : i32
    %c0_i32_1 = arith.constant 0 : i32
    return %c0_i32, %c0_i32_0 : i32, i32
  }
  func.func @transform_5(%arg0: i32) -> (i32, i32, i32) {
    %c0_i32 = arith.constant 0 : i32
    %c0_i32_0 = arith.constant 0 : i32
    %c0_i32_1 = arith.constant 0 : i32
    return %arg0, %c0_i32, %c0_i32_0 : i32, i32, i32
  }
  func.func @transform_6(%arg0: i32) -> (i32, i32, i32) {
    %c0_i32 = arith.constant 0 : i32
    %c0_i32_0 = arith.constant 0 : i32
    %c0_i32_1 = arith.constant 0 : i32
    return %arg0, %c0_i32, %c0_i32_0 : i32, i32, i32
  }
}

</mosaic_0001>

<llo_original>
// kernel: forward.1
$region0: #{forward.1}
  #allocation0 [shape = 'u32[]', space=smem, size = 0x4, offset = 0x4, fixed_abs, tag = 'smem constant byte address 0x4 - core index']
  #allocation1 [shape = 'u32[144,128]{1,0:T(1,128)}', space=vmem, size = 0x12000, scoped, tag = 'internal scratch']
  #allocation2 [shape = 'f32[72,576]{1,0:T(8,128)}', space=vmem, size = 0x2d000, scoped, tag = 'scratch operand']
  %s0 = inlined_call_operand.vmem [shape: f32[2,8,342], index: 0, kind: input, shape index: {}]
  %s1 = inlined_call_operand.vmem [shape: f32[20,72], index: 1, kind: input, shape index: {}]
  %s2 = inlined_call_operand.vmem [shape: f32[1,288], index: 2, kind: input, shape index: {}]
  %s3 = inlined_call_operand.vmem [shape: f32[20,10], index: 3, kind: input, shape index: {}]
  %s4 = inlined_call_operand.vmem [shape: f32[10,20], index: 4, kind: input, shape index: {}]
  %s5 = inlined_call_operand.vmem [shape: f32[2,20,288], index: 5, kind: output, shape index: {0}]
  %s6 = inlined_call_operand.vmem [shape: f32[1,10,2], index: 6, kind: output, shape index: {1}]
  %7 = xla_tuple %s5, %s6
  %s8 = sld [smem:[#allocation0]]
  $region38: #{forward.1} parent=0
    _
  %s10 = ssub.s32 1, %s8
  %s11 = scalar_select 0, %s10, %s8
  // Predicated region
  $region2: #{forward.1} parent=0 // pred_check
    _
  $region3: #{forward.1} parent=0 // pred_check_branch
    %13 = sbr.rel (0) target = $region5
  $region4: #{forward.1} parent=0 // pred_region
    _
  $region5: #{forward.1} parent=0 // pred_fallthru
    _
  // Predicated region
  $region6: #{forward.1} parent=0 // pred_check
    _
  $region7: #{forward.1} parent=0 // pred_check_branch
    %15 = sbr.rel (0) target = $region9
  $region8: #{forward.1} parent=0 // pred_region
    _
  $region9: #{forward.1} parent=0 // pred_fallthru
    _
  // Predicated region
  $region10: #{forward.1} parent=0 // pred_check
    _
  $region11: #{forward.1} parent=0 // pred_check_branch
    %17 = sbr.rel (0) target = $region13
  $region12: #{forward.1} parent=0 // pred_region
    _
  $region13: #{forward.1} parent=0 // pred_fallthru
    _
  // Predicated region
  $region14: #{forward.1} parent=0 // pred_check
    _
  $region15: #{forward.1} parent=0 // pred_check_branch
    %19 = sbr.rel (0) target = $region17
  $region16: #{forward.1} parent=0 // pred_region
    _
  $region17: #{forward.1} parent=0 // pred_fallthru
    _
  // Predicated region
  $region18: #{forward.1} parent=0 // pred_check
    _
  $region19: #{forward.1} parent=0 // pred_check_branch
    %21 = sbr.rel (0) target = $region21
  $region20: #{forward.1} parent=0 // pred_region
    _
  $region21: #{forward.1} parent=0 // pred_fallthru
    _
  %v22 = vld [vmem:[%s0] sm:$0xff]
  %v23 = vld [vmem:[%s0 + $0x8] sm:$0xff]
  %v24 = vld [vmem:[%s0 + $0x10] sm:$0xff]
  %25 = vst [vmem:[#allocation2] sm:$0xff] %v22
  %26 = vst [vmem:[#allocation2 + $0x8] sm:$0xff] %v23
  %vm27 = vcmask 261120
  %28 = vst.msk [vmem:[#allocation2 + $0x10] sm:$0xff] %vm27, %v24
  %v29 = vld [vmem:[%s0] sm:$0xff]
  %v30 = vld [vmem:[%s0 + $0x8] sm:$0xff]
  %v31 = vld [vmem:[%s0 + $0x10] sm:$0xff]
  %35 = vrot.lane.b32.xlu0 %v29, 127
  %v36 = vpop.permute.xlu0 %35
  %37 = vrot.lane.b32.xlu0 %v30, 127
  %v38 = vpop.permute.xlu0 %37
  %39 = vrot.lane.b32.xlu0 %v31, 127
  %v40 = vpop.permute.xlu0 %39
  %vm41 = vcmask 1039360
  %v42 = vsel %vm41, %v36, %v38
  %v43 = vsel %vm41, %v38, %v40
  %47 = vst [vmem:[#allocation2 + $0x28] sm:$0xff] %v42
  %48 = vst [vmem:[#allocation2 + $0x30] sm:$0xff] %v43
  %49 = vst.msk [vmem:[#allocation2 + $0x38] sm:$0xff] %vm27, %v40
  %v50 = vld [vmem:[%s0] sm:$0xff]
  %v51 = vld [vmem:[%s0 + $0x8] sm:$0xff]
  %v52 = vld [vmem:[%s0 + $0x10] sm:$0xff]
  %56 = vrot.lane.b32.xlu0 %v50, 126
  %v57 = vpop.permute.xlu0 %56
  %58 = vrot.lane.b32.xlu0 %v51, 126
  %v59 = vpop.permute.xlu0 %58
  %60 = vrot.lane.b32.xlu0 %v52, 126
  %v61 = vpop.permute.xlu0 %60
  %vm62 = vcmask 1031168
  %v63 = vsel %vm62, %v57, %v59
  %v64 = vsel %vm62, %v59, %v61
  %68 = vst [vmem:[#allocation2 + $0x50] sm:$0xff] %v63
  %69 = vst [vmem:[#allocation2 + $0x58] sm:$0xff] %v64
  %70 = vst.msk [vmem:[#allocation2 + $0x60] sm:$0xff] %vm27, %v61
  %v71 = vld [vmem:[%s0] sm:$0xff]
  %v72 = vld [vmem:[%s0 + $0x8] sm:$0xff]
  %v73 = vld [vmem:[%s0 + $0x10] sm:$0xff]
  %77 = vrot.lane.b32.xlu0 %v71, 110
  %v78 = vpop.permute.xlu0 %77
  %79 = vrot.lane.b32.xlu0 %v72, 110
  %v80 = vpop.permute.xlu0 %79
  %81 = vrot.lane.b32.xlu0 %v73, 110
  %v82 = vpop.permute.xlu0 %81
  %vm83 = vcmask 900096
  %v84 = vsel %vm83, %v78, %v80
  %v85 = vsel %vm83, %v80, %v82
  %89 = vst [vmem:[#allocation2 + $0x78] sm:$0xff] %v84
  %90 = vst [vmem:[#allocation2 + $0x80] sm:$0xff] %v85
  %91 = vst.msk [vmem:[#allocation2 + $0x88] sm:$0xff] %vm27, %v82
  %v92 = vld [vmem:[%s0] sm:$0xff]
  %v93 = vld [vmem:[%s0 + $0x8] sm:$0xff]
  %v94 = vld [vmem:[%s0 + $0x10] sm:$0xff]
  %98 = vrot.lane.b32.xlu0 %v92, 109
  %v99 = vpop.permute.xlu0 %98
  %100 = vrot.lane.b32.xlu0 %v93, 109
  %v101 = vpop.permute.xlu0 %100
  %102 = vrot.lane.b32.xlu0 %v94, 109
  %v103 = vpop.permute.xlu0 %102
  %vm104 = vcmask 891904
  %v105 = vsel %vm104, %v99, %v101
  %v106 = vsel %vm104, %v101, %v103
  %110 = vst [vmem:[#allocation2 + $0xa0] sm:$0xff] %v105
  %111 = vst [vmem:[#allocation2 + $0xa8] sm:$0xff] %v106
  %112 = vst.msk [vmem:[#allocation2 + $0xb0] sm:$0xff] %vm27, %v103
  %v113 = vld [vmem:[%s0] sm:$0xff]
  %v114 = vld [vmem:[%s0 + $0x8] sm:$0xff]
  %v115 = vld [vmem:[%s0 + $0x10] sm:$0xff]
  %119 = vrot.lane.b32.xlu0 %v113, 108
  %v120 = vpop.permute.xlu0 %119
  %121 = vrot.lane.b32.xlu0 %v114, 108
  %v122 = vpop.permute.xlu0 %121
  %123 = vrot.lane.b32.xlu0 %v115, 108
  %v124 = vpop.permute.xlu0 %123
  %vm125 = vcmask 883712
  %v126 = vsel %vm125, %v120, %v122
  %v127 = vsel %vm125, %v122, %v124
  %131 = vst [vmem:[#allocation2 + $0xc8] sm:$0xff] %v126
  %132 = vst [vmem:[#allocation2 + $0xd0] sm:$0xff] %v127
  %133 = vst.msk [vmem:[#allocation2 + $0xd8] sm:$0xff] %vm27, %v124
  %v134 = vld [vmem:[%s0] sm:$0xff]
  %v135 = vld [vmem:[%s0 + $0x8] sm:$0xff]
  %v136 = vld [vmem:[%s0 + $0x10] sm:$0xff]
  %140 = vrot.lane.b32.xlu0 %v134, 92
  %v141 = vpop.permute.xlu0 %140
  %142 = vrot.lane.b32.xlu0 %v135, 92
  %v143 = vpop.permute.xlu0 %142
  %144 = vrot.lane.b32.xlu0 %v136, 92
  %v145 = vpop.permute.xlu0 %144
  %vm146 = vcmask 752640
  %v147 = vsel %vm146, %v141, %v143
  %v148 = vsel %vm146, %v143, %v145
  %152 = vst [vmem:[#allocation2 + $0xf0] sm:$0xff] %v147
  %153 = vst [vmem:[#allocation2 + $0xf8] sm:$0xff] %v148
  %154 = vst.msk [vmem:[#allocation2 + $0x100] sm:$0xff] %vm27, %v145
  %v155 = vld [vmem:[%s0] sm:$0xff]
  %v156 = vld [vmem:[%s0 + $0x8] sm:$0xff]
  %v157 = vld [vmem:[%s0 + $0x10] sm:$0xff]
  %161 = vrot.lane.b32.xlu0 %v155, 91
  %v162 = vpop.permute.xlu0 %161
  %163 = vrot.lane.b32.xlu0 %v156, 91
  %v164 = vpop.permute.xlu0 %163
  %165 = vrot.lane.b32.xlu0 %v157, 91
  %v166 = vpop.permute.xlu0 %165
  %vm167 = vcmask 744448
  %v168 = vsel %vm167, %v162, %v164
  %v169 = vsel %vm167, %v164, %v166
  %173 = vst [vmem:[#allocation2 + $0x118] sm:$0xff] %v168
  %174 = vst [vmem:[#allocation2 + $0x120] sm:$0xff] %v169
  %175 = vst.msk [vmem:[#allocation2 + $0x128] sm:$0xff] %vm27, %v166
  %v176 = vld [vmem:[%s0] sm:$0xff]
  %v177 = vld [vmem:[%s0 + $0x8] sm:$0xff]
  %v178 = vld [vmem:[%s0 + $0x10] sm:$0xff]
  %182 = vrot.lane.b32.xlu0 %v176, 90
  %v183 = vpop.permute.xlu0 %182
  %184 = vrot.lane.b32.xlu0 %v177, 90
  %v185 = vpop.permute.xlu0 %184
  %186 = vrot.lane.b32.xlu0 %v178, 90
  %v187 = vpop.permute.xlu0 %186
  %vm188 = vcmask 736256
  %v189 = vsel %vm188, %v183, %v185
  %v190 = vsel %vm188, %v185, %v187
  %194 = vst [vmem:[#allocation2 + $0x140] sm:$0xff] %v189
  %195 = vst [vmem:[#allocation2 + $0x148] sm:$0xff] %v190
  %196 = vst.msk [vmem:[#allocation2 + $0x150] sm:$0xff] %vm27, %v187
  %s197 = scalar_lea.vmem %s0, 24
  %v198 = vld [vmem:[%s197] sm:$0xff]
  %v199 = vld [vmem:[%s197 + $0x8] sm:$0xff]
  %v200 = vld [vmem:[%s197 + $0x10] sm:$0xff]
  %204 = vrot.lane.b32.xlu0 %v198, 32
  %v205 = vpop.permute.xlu0 %204
  %206 = vrot.lane.b32.xlu0 %v199, 32
  %v207 = vpop.permute.xlu0 %206
  %208 = vrot.lane.b32.xlu0 %v200, 32
  %v209 = vpop.permute.xlu0 %208
  %v210 = vsel %vm27, %v205, %v207
  %v211 = vsel %vm27, %v207, %v209
  %vm215 = vcmask 1047808
  %216 = vst.msk [vmem:[#allocation2 + $0x10] sm:$0xff] %vm215, %v205
  %217 = vst [vmem:[#allocation2 + $0x18] sm:$0xff] %v210
  %vm218 = vcmask 523264
  %219 = vst.msk [vmem:[#allocation2 + $0x20] sm:$0xff] %vm218, %v211
  %v220 = vld [vmem:[%s197] sm:$0xff]
  %v221 = vld [vmem:[%s197 + $0x8] sm:$0xff]
  %v222 = vld [vmem:[%s197 + $0x10] sm:$0xff]
  %226 = vrot.lane.b32.xlu0 %v220, 31
  %v227 = vpop.permute.xlu0 %226
  %228 = vrot.lane.b32.xlu0 %v221, 31
  %v229 = vpop.permute.xlu0 %228
  %230 = vrot.lane.b32.xlu0 %v222, 31
  %v231 = vpop.permute.xlu0 %230
  %vm232 = vcmask 252928
  %v233 = vsel %vm232, %v227, %v229
  %v234 = vsel %vm232, %v229, %v231
  %238 = vst.msk [vmem:[#allocation2 + $0x38] sm:$0xff] %vm215, %v227
  %239 = vst [vmem:[#allocation2 + $0x40] sm:$0xff] %v233
  %240 = vst.msk [vmem:[#allocation2 + $0x48] sm:$0xff] %vm218, %v234
  %v241 = vld [vmem:[%s197] sm:$0xff]
  %v242 = vld [vmem:[%s197 + $0x8] sm:$0xff]
  %v243 = vld [vmem:[%s197 + $0x10] sm:$0xff]
  %247 = vrot.lane.b32.xlu0 %v241, 30
  %v248 = vpop.permute.xlu0 %247
  %249 = vrot.lane.b32.xlu0 %v242, 30
  %v250 = vpop.permute.xlu0 %249
  %251 = vrot.lane.b32.xlu0 %v243, 30
  %v252 = vpop.permute.xlu0 %251
  %vm253 = vcmask 244736
  %v254 = vsel %vm253, %v248, %v250
  %v255 = vsel %vm253, %v250, %v252
  %259 = vst.msk [vmem:[#allocation2 + $0x60] sm:$0xff] %vm215, %v248
  %260 = vst [vmem:[#allocation2 + $0x68] sm:$0xff] %v254
  %261 = vst.msk [vmem:[#allocation2 + $0x70] sm:$0xff] %vm218, %v255
  %v262 = vld [vmem:[%s197] sm:$0xff]
  %v263 = vld [vmem:[%s197 + $0x8] sm:$0xff]
  %v264 = vld [vmem:[%s197 + $0x10] sm:$0xff]
  %268 = vrot.lane.b32.xlu0 %v262, 14
  %v269 = vpop.permute.xlu0 %268
  %270 = vrot.lane.b32.xlu0 %v263, 14
  %v271 = vpop.permute.xlu0 %270
  %272 = vrot.lane.b32.xlu0 %v264, 14
  %v273 = vpop.permute.xlu0 %272
  %vm274 = vcmask 113664
  %v275 = vsel %vm274, %v269, %v271
  %v276 = vsel %vm274, %v271, %v273
  %280 = vst.msk [vmem:[#allocation2 + $0x88] sm:$0xff] %vm215, %v269
  %281 = vst [vmem:[#allocation2 + $0x90] sm:$0xff] %v275
  %282 = vst.msk [vmem:[#allocation2 + $0x98] sm:$0xff] %vm218, %v276
  %v283 = vld [vmem:[%s197] sm:$0xff]
  %v284 = vld [vmem:[%s197 + $0x8] sm:$0xff]
  %v285 = vld [vmem:[%s197 + $0x10] sm:$0xff]
  %289 = vrot.lane.b32.xlu0 %v283, 13
  %v290 = vpop.permute.xlu0 %289
  %291 = vrot.lane.b32.xlu0 %v284, 13
  %v292 = vpop.permute.xlu0 %291
  %293 = vrot.lane.b32.xlu0 %v285, 13
  %v294 = vpop.permute.xlu0 %293
  %vm295 = vcmask 105472
  %v296 = vsel %vm295, %v290, %v292
  %v297 = vsel %vm295, %v292, %v294
  %301 = vst.msk [vmem:[#allocation2 + $0xb0] sm:$0xff] %vm215, %v290
  %302 = vst [vmem:[#allocation2 + $0xb8] sm:$0xff] %v296
  %303 = vst.msk [vmem:[#allocation2 + $0xc0] sm:$0xff] %vm218, %v297
  %v304 = vld [vmem:[%s197] sm:$0xff]
  %v305 = vld [vmem:[%s197 + $0x8] sm:$0xff]
  %v306 = vld [vmem:[%s197 + $0x10] sm:$0xff]
  %310 = vrot.lane.b32.xlu0 %v304, 12
  %v311 = vpop.permute.xlu0 %310
  %312 = vrot.lane.b32.xlu0 %v305, 12
  %v313 = vpop.permute.xlu0 %312
  %314 = vrot.lane.b32.xlu0 %v306, 12
  %v315 = vpop.permute.xlu0 %314
  %vm316 = vcmask 97280
  %v317 = vsel %vm316, %v311, %v313
  %v318 = vsel %vm316, %v313, %v315
  %322 = vst.msk [vmem:[#allocation2 + $0xd8] sm:$0xff] %vm215, %v311
  %323 = vst [vmem:[#allocation2 + $0xe0] sm:$0xff] %v317
  %324 = vst.msk [vmem:[#allocation2 + $0xe8] sm:$0xff] %vm218, %v318
  %v325 = vld [vmem:[%s197] sm:$0xff]
  %v326 = vld [vmem:[%s197 + $0x8] sm:$0xff]
  %v327 = vld [vmem:[%s197 + $0x10] sm:$0xff]
  %331 = vrot.lane.b32.xlu0 %v325, 124
  %v332 = vpop.permute.xlu0 %331
  %333 = vrot.lane.b32.xlu0 %v326, 124
  %v334 = vpop.permute.xlu0 %333
  %335 = vrot.lane.b32.xlu0 %v327, 124
  %v336 = vpop.permute.xlu0 %335
  %vm337 = vcmask 1014784
  %v338 = vsel %vm337, %v332, %v334
  %v339 = vsel %vm337, %v334, %v336
  %343 = vst.msk [vmem:[#allocation2 + $0x100] sm:$0xff] %vm215, %v338
  %344 = vst [vmem:[#allocation2 + $0x108] sm:$0xff] %v339
  %345 = vst.msk [vmem:[#allocation2 + $0x110] sm:$0xff] %vm218, %v336
  %v346 = vld [vmem:[%s197] sm:$0xff]
  %v347 = vld [vmem:[%s197 + $0x8] sm:$0xff]
  %v348 = vld [vmem:[%s197 + $0x10] sm:$0xff]
  %352 = vrot.lane.b32.xlu0 %v346, 123
  %v353 = vpop.permute.xlu0 %352
  %354 = vrot.lane.b32.xlu0 %v347, 123
  %v355 = vpop.permute.xlu0 %354
  %356 = vrot.lane.b32.xlu0 %v348, 123
  %v357 = vpop.permute.xlu0 %356
  %vm358 = vcmask 1006592
  %v359 = vsel %vm358, %v353, %v355
  %v360 = vsel %vm358, %v355, %v357
  %364 = vst.msk [vmem:[#allocation2 + $0x128] sm:$0xff] %vm215, %v359
  %365 = vst [vmem:[#allocation2 + $0x130] sm:$0xff] %v360
  %366 = vst.msk [vmem:[#allocation2 + $0x138] sm:$0xff] %vm218, %v357
  %v367 = vld [vmem:[%s197] sm:$0xff]
  %v368 = vld [vmem:[%s197 + $0x8] sm:$0xff]
  %v369 = vld [vmem:[%s197 + $0x10] sm:$0xff]
  %373 = vrot.lane.b32.xlu0 %v367, 122
  %v374 = vpop.permute.xlu0 %373
  %375 = vrot.lane.b32.xlu0 %v368, 122
  %v376 = vpop.permute.xlu0 %375
  %377 = vrot.lane.b32.xlu0 %v369, 122
  %v378 = vpop.permute.xlu0 %377
  %vm379 = vcmask 998400
  %v380 = vsel %vm379, %v374, %v376
  %v381 = vsel %vm379, %v376, %v378
  %385 = vst.msk [vmem:[#allocation2 + $0x150] sm:$0xff] %vm215, %v380
  %386 = vst [vmem:[#allocation2 + $0x158] sm:$0xff] %v381
  %387 = vst.msk [vmem:[#allocation2 + $0x160] sm:$0xff] %vm218, %v378
  %v388 = vld [vmem:[%s1] sm:$0xff]
  %v389 = vld [vmem:[%s1 + $0x8] sm:$0xff]
  %v390 = vld [vmem:[%s1 + $0x10] sm:$0xf]
  %v391 = vld [vmem:[#allocation2] sm:$0xff]
  %v392 = vld [vmem:[#allocation2 + $0x8] sm:$0xff]
  %v393 = vld [vmem:[#allocation2 + $0x10] sm:$0xff]
  %v394 = vld [vmem:[#allocation2 + $0x18] sm:$0xff]
  %v395 = vld [vmem:[#allocation2 + $0x20] sm:$0xff]
  %v396 = vld [vmem:[#allocation2 + $0x28] sm:$0xff]
  %v397 = vld [vmem:[#allocation2 + $0x30] sm:$0xff]
  %v398 = vld [vmem:[#allocation2 + $0x38] sm:$0xff]
  %v399 = vld [vmem:[#allocation2 + $0x40] sm:$0xff]
  %v400 = vld [vmem:[#allocation2 + $0x48] sm:$0xff]
  %v401 = vld [vmem:[#allocation2 + $0x50] sm:$0xff]
  %v402 = vld [vmem:[#allocation2 + $0x58] sm:$0xff]
  %v403 = vld [vmem:[#allocation2 + $0x60] sm:$0xff]
  %v404 = vld [vmem:[#allocation2 + $0x68] sm:$0xff]
  %v405 = vld [vmem:[#allocation2 + $0x70] sm:$0xff]
  %v406 = vld [vmem:[#allocation2 + $0x78] sm:$0xff]
  %v407 = vld [vmem:[#allocation2 + $0x80] sm:$0xff]
  %v408 = vld [vmem:[#allocation2 + $0x88] sm:$0xff]
  %v409 = vld [vmem:[#allocation2 + $0x90] sm:$0xff]
  %v410 = vld [vmem:[#allocation2 + $0x98] sm:$0xff]
  %v411 = vld [vmem:[#allocation2 + $0xa0] sm:$0xff]
  %v412 = vld [vmem:[#allocation2 + $0xa8] sm:$0xff]
  %v413 = vld [vmem:[#allocation2 + $0xb0] sm:$0xff]
  %v414 = vld [vmem:[#allocation2 + $0xb8] sm:$0xff]
  %v415 = vld [vmem:[#allocation2 + $0xc0] sm:$0xff]
  %v416 = vld [vmem:[#allocation2 + $0xc8] sm:$0xff]
  %v417 = vld [vmem:[#allocation2 + $0xd0] sm:$0xff]
  %v418 = vld [vmem:[#allocation2 + $0xd8] sm:$0xff]
  %v419 = vld [vmem:[#allocation2 + $0xe0] sm:$0xff]
  %v420 = vld [vmem:[#allocation2 + $0xe8] sm:$0xff]
  %v421 = vld [vmem:[#allocation2 + $0xf0] sm:$0xff]
  %v422 = vld [vmem:[#allocation2 + $0xf8] sm:$0xff]
  %v423 = vld [vmem:[#allocation2 + $0x100] sm:$0xff]
  %v424 = vld [vmem:[#allocation2 + $0x108] sm:$0xff]
  %v425 = vld [vmem:[#allocation2 + $0x110] sm:$0xff]
  %v426 = vld [vmem:[#allocation2 + $0x118] sm:$0xff]
  %v427 = vld [vmem:[#allocation2 + $0x120] sm:$0xff]
  %v428 = vld [vmem:[#allocation2 + $0x128] sm:$0xff]
  %v429 = vld [vmem:[#allocation2 + $0x130] sm:$0xff]
  %v430 = vld [vmem:[#allocation2 + $0x138] sm:$0xff]
  %v431 = vld [vmem:[#allocation2 + $0x140] sm:$0xff]
  %v432 = vld [vmem:[#allocation2 + $0x148] sm:$0xff]
  %v433 = vld [vmem:[#allocation2 + $0x150] sm:$0xff]
  %v434 = vld [vmem:[#allocation2 + $0x158] sm:$0xff]
  %v435 = vld [vmem:[#allocation2 + $0x160] sm:$0xff]
  %vm436 = vcmask 588800
  %v438 = vsel %vm436, %v388, 0
  %v441 = vsel %vm436, %v389, 0
  %v444 = vsel %vm436, %v390, 0
  %446 = vmatprep.subr.mxu0 %v392
  %447 = vmatpush1.msra.mxu0 %v391
  %448 = vmatprep.subr.mxu0 %v397
  %449 = vmatpush1.msra.mxu0 %v396
  %450 = vmatprep.subr.mxu0 %v402
  %451 = vmatpush1.msra.mxu0 %v401
  %452 = vmatprep.subr.mxu0 %v407
  %453 = vmatpush1.msra.mxu0 %v406
  %454 = vmatprep.subr.mxu0 %v412
  %455 = vmatpush1.msra.mxu0 %v411
  %456 = vmatprep.subr.mxu0 %v417
  %457 = vmatpush1.msra.mxu0 %v416
  %458 = vmatprep.subr.mxu0 %v422
  %459 = vmatpush1.msra.mxu0 %v421
  %460 = vmatprep.subr.mxu0 %v427
  %461 = vmatpush1.msra.mxu0 %v426
  %462 = vmatprep.subr.mxu0 %v432
  %463 = vmatpush1.msra.mxu0 %v431
  %464 = vmatprep.subr.mxu0 0.0
  %465 = vmatpush1.msra.mxu0 0.0
  %466 = vmatprep.subr.mxu0 0.0
  %467 = vmatpush1.msra.mxu0 0.0
  %468 = vmatprep.subr.mxu0 0.0
  %469 = vmatpush1.msra.mxu0 0.0
  %470 = vmatprep.subr.mxu0 0.0
  %471 = vmatpush1.msra.mxu0 0.0
  %472 = vmatprep.subr.mxu0 0.0
  %473 = vmatpush1.msra.mxu0 0.0
  %474 = vmatprep.subr.mxu0 0.0
  %475 = vmatpush1.msra.mxu0 0.0
  %476 = vmatprep.subr.mxu0 0.0
  %477 = vmatpush1.msra.mxu0 0.0
  %478 = vmatprep.subr.mxu0 0.0
  %479 = vmatpush1.msra.mxu0 0.0
  %480 = vmatprep.subr.mxu0 0.0
  %481 = vmatpush1.msra.mxu0 0.0
  %482 = vmatprep.subr.mxu0 0.0
  %483 = vmatpush1.msra.mxu0 0.0
  %484 = vmatprep.subr.mxu0 0.0
  %485 = vmatpush1.msra.mxu0 0.0
  %486 = vmatprep.subr.mxu0 0.0
  %487 = vmatpush1.msra.mxu0 0.0
  %488 = vmatprep.subr.mxu0 0.0
  %489 = vmatpush1.msra.mxu0 0.0
  %490 = vmatprep.subr.mxu0 0.0
  %491 = vmatpush1.msra.mxu0 0.0
  %492 = vmatprep.subr.mxu0 0.0
  %493 = vmatpush1.msra.mxu0 0.0
  %494 = vmatprep.subr.mxu0 0.0
  %495 = vmatpush1.msra.mxu0 0.0
  %496 = vmatprep.subr.mxu0 0.0
  %497 = vmatpush1.msra.mxu0 0.0
  %498 = vmatprep.subr.mxu0 0.0
  %499 = vmatpush1.msra.mxu0 0.0
  %500 = vmatprep.subr.mxu0 0.0
  %501 = vmatpush1.msra.mxu0 0.0
  %502 = vmatprep.subr.mxu0 0.0
  %503 = vmatpush1.msra.mxu0 0.0
  %504 = vmatprep.subr.mxu0 0.0
  %505 = vmatpush1.msra.mxu0 0.0
  %506 = vmatprep.subr.mxu0 0.0
  %507 = vmatpush1.msra.mxu0 0.0
  %508 = vmatprep.subr.mxu0 0.0
  %509 = vmatpush1.msra.mxu0 0.0
  %510 = vmatprep.mubr.f32.mxu0 0.0
  %511 = vmatmul.mubr.f32.gmra.mrb[0].mxu0 %v438
  %v512 = vpop.f32.mrb[0].mxu0
  %v513 = vadd.f32 0.0, %v512
  %v514 = vpop.f32.mrb[0].mxu0
  %v515 = vadd.f32 0.0, %v514
  %516 = vmatprep.mubr.f32.mxu0 0.0
  %517 = vmatmul.mubr.f32.gmra.mrb[0].mxu0 %v441
  %v518 = vpop.f32.mrb[0].mxu0
  %v519 = vadd.f32 0.0, %v518
  %v520 = vpop.f32.mrb[0].mxu0
  %v521 = vadd.f32 0.0, %v520
  %522 = vmatprep.mubr.f32.mxu0 0.0
  %523 = vmatmul.mubr.f32.gmra.mrb[0].mxu0 %v444
  %v524 = vpop.f32.mrb[0].mxu0
  %v525 = vadd.f32 0.0, %v524
  %v526 = vpop.f32.mrb[0].mxu0
  %v527 = vadd.f32 0.0, %v526
  %528 = vdwg.mxu0
  %529 = vmatprep.subr.mxu0 %v394
  %530 = vmatpush1.msra.mxu0 %v393
  %531 = vmatprep.subr.mxu0 %v399
  %532 = vmatpush1.msra.mxu0 %v398
  %533 = vmatprep.subr.mxu0 %v404
  %534 = vmatpush1.msra.mxu0 %v403
  %535 = vmatprep.subr.mxu0 %v409
  %536 = vmatpush1.msra.mxu0 %v408
  %537 = vmatprep.subr.mxu0 %v414
  %538 = vmatpush1.msra.mxu0 %v413
  %539 = vmatprep.subr.mxu0 %v419
  %540 = vmatpush1.msra.mxu0 %v418
  %541 = vmatprep.subr.mxu0 %v424
  %542 = vmatpush1.msra.mxu0 %v423
  %543 = vmatprep.subr.mxu0 %v429
  %544 = vmatpush1.msra.mxu0 %v428
  %545 = vmatprep.subr.mxu0 %v434
  %546 = vmatpush1.msra.mxu0 %v433
  %547 = vmatprep.subr.mxu0 0.0
  %548 = vmatpush1.msra.mxu0 0.0
  %549 = vmatprep.subr.mxu0 0.0
  %550 = vmatpush1.msra.mxu0 0.0
  %551 = vmatprep.subr.mxu0 0.0
  %552 = vmatpush1.msra.mxu0 0.0
  %553 = vmatprep.subr.mxu0 0.0
  %554 = vmatpush1.msra.mxu0 0.0
  %555 = vmatprep.subr.mxu0 0.0
  %556 = vmatpush1.msra.mxu0 0.0
  %557 = vmatprep.subr.mxu0 0.0
  %558 = vmatpush1.msra.mxu0 0.0
  %559 = vmatprep.subr.mxu0 0.0
  %560 = vmatpush1.msra.mxu0 0.0
  %561 = vmatprep.subr.mxu0 0.0
  %562 = vmatpush1.msra.mxu0 0.0
  %563 = vmatprep.subr.mxu0 0.0
  %564 = vmatpush1.msra.mxu0 0.0
  %565 = vmatprep.subr.mxu0 0.0
  %566 = vmatpush1.msra.mxu0 0.0
  %567 = vmatprep.subr.mxu0 0.0
  %568 = vmatpush1.msra.mxu0 0.0
  %569 = vmatprep.subr.mxu0 0.0
  %570 = vmatpush1.msra.mxu0 0.0
  %571 = vmatprep.subr.mxu0 0.0
  %572 = vmatpush1.msra.mxu0 0.0
  %573 = vmatprep.subr.mxu0 0.0
  %574 = vmatpush1.msra.mxu0 0.0
  %575 = vmatprep.subr.mxu0 0.0
  %576 = vmatpush1.msra.mxu0 0.0
  %577 = vmatprep.subr.mxu0 0.0
  %578 = vmatpush1.msra.mxu0 0.0
  %579 = vmatprep.subr.mxu0 0.0
  %580 = vmatpush1.msra.mxu0 0.0
  %581 = vmatprep.subr.mxu0 0.0
  %582 = vmatpush1.msra.mxu0 0.0
  %583 = vmatprep.subr.mxu0 0.0
  %584 = vmatpush1.msra.mxu0 0.0
  %585 = vmatprep.subr.mxu0 0.0
  %586 = vmatpush1.msra.mxu0 0.0
  %587 = vmatprep.subr.mxu0 0.0
  %588 = vmatpush1.msra.mxu0 0.0
  %589 = vmatprep.subr.mxu0 0.0
  %590 = vmatpush1.msra.mxu0 0.0
  %591 = vmatprep.subr.mxu0 0.0
  %592 = vmatpush1.msra.mxu0 0.0
  %593 = vmatprep.mubr.f32.mxu0 0.0
  %594 = vmatmul.mubr.f32.gmra.mrb[0].mxu0 %v438
  %v595 = vpop.f32.mrb[0].mxu0
  %v596 = vadd.f32 0.0, %v595
  %v597 = vpop.f32.mrb[0].mxu0
  %v598 = vadd.f32 0.0, %v597
  %599 = vmatprep.mubr.f32.mxu0 0.0
  %600 = vmatmul.mubr.f32.gmra.mrb[0].mxu0 %v441
  %v601 = vpop.f32.mrb[0].mxu0
  %v602 = vadd.f32 0.0, %v601
  %v603 = vpop.f32.mrb[0].mxu0
  %v604 = vadd.f32 0.0, %v603
  %605 = vmatprep.mubr.f32.mxu0 0.0
  %606 = vmatmul.mubr.f32.gmra.mrb[0].mxu0 %v444
  %v607 = vpop.f32.mrb[0].mxu0
  %v608 = vadd.f32 0.0, %v607
  %v609 = vpop.f32.mrb[0].mxu0
  %v610 = vadd.f32 0.0, %v609
  %611 = vdwg.mxu0
  %612 = vmatprep.subr.mxu0 0.0
  %613 = vmatpush1.msra.mxu0 %v395
  %614 = vmatprep.subr.mxu0 0.0
  %615 = vmatpush1.msra.mxu0 %v400
  %616 = vmatprep.subr.mxu0 0.0
  %617 = vmatpush1.msra.mxu0 %v405
  %618 = vmatprep.subr.mxu0 0.0
  %619 = vmatpush1.msra.mxu0 %v410
  %620 = vmatprep.subr.mxu0 0.0
  %621 = vmatpush1.msra.mxu0 %v415
  %622 = vmatprep.subr.mxu0 0.0
  %623 = vmatpush1.msra.mxu0 %v420
  %624 = vmatprep.subr.mxu0 0.0
  %625 = vmatpush1.msra.mxu0 %v425
  %626 = vmatprep.subr.mxu0 0.0
  %627 = vmatpush1.msra.mxu0 %v430
  %628 = vmatprep.subr.mxu0 0.0
  %629 = vmatpush1.msra.mxu0 %v435
  %630 = vmatprep.subr.mxu0 0.0
  %631 = vmatpush1.msra.mxu0 0.0
  %632 = vmatprep.subr.mxu0 0.0
  %633 = vmatpush1.msra.mxu0 0.0
  %634 = vmatprep.subr.mxu0 0.0
  %635 = vmatpush1.msra.mxu0 0.0
  %636 = vmatprep.subr.mxu0 0.0
  %637 = vmatpush1.msra.mxu0 0.0
  %638 = vmatprep.subr.mxu0 0.0
  %639 = vmatpush1.msra.mxu0 0.0
  %640 = vmatprep.subr.mxu0 0.0
  %641 = vmatpush1.msra.mxu0 0.0
  %642 = vmatprep.subr.mxu0 0.0
  %643 = vmatpush1.msra.mxu0 0.0
  %644 = vmatprep.subr.mxu0 0.0
  %645 = vmatpush1.msra.mxu0 0.0
  %646 = vmatprep.subr.mxu0 0.0
  %647 = vmatpush1.msra.mxu0 0.0
  %648 = vmatprep.subr.mxu0 0.0
  %649 = vmatpush1.msra.mxu0 0.0
  %650 = vmatprep.subr.mxu0 0.0
  %651 = vmatpush1.msra.mxu0 0.0
  %652 = vmatprep.subr.mxu0 0.0
  %653 = vmatpush1.msra.mxu0 0.0
  %654 = vmatprep.subr.mxu0 0.0
  %655 = vmatpush1.msra.mxu0 0.0
  %656 = vmatprep.subr.mxu0 0.0
  %657 = vmatpush1.msra.mxu0 0.0
  %658 = vmatprep.subr.mxu0 0.0
  %659 = vmatpush1.msra.mxu0 0.0
  %660 = vmatprep.subr.mxu0 0.0
  %661 = vmatpush1.msra.mxu0 0.0
  %662 = vmatprep.subr.mxu0 0.0
  %663 = vmatpush1.msra.mxu0 0.0
  %664 = vmatprep.subr.mxu0 0.0
  %665 = vmatpush1.msra.mxu0 0.0
  %666 = vmatprep.subr.mxu0 0.0
  %667 = vmatpush1.msra.mxu0 0.0
  %668 = vmatprep.subr.mxu0 0.0
  %669 = vmatpush1.msra.mxu0 0.0
  %670 = vmatprep.subr.mxu0 0.0
  %671 = vmatpush1.msra.mxu0 0.0
  %672 = vmatprep.subr.mxu0 0.0
  %673 = vmatpush1.msra.mxu0 0.0
  %674 = vmatprep.subr.mxu0 0.0
  %675 = vmatpush1.msra.mxu0 0.0
  %676 = vmatprep.mubr.f32.mxu0 0.0
  %677 = vmatmul.mubr.f32.gmra.mrb[0].mxu0 %v438
  %v678 = vpop.f32.mrb[0].mxu0
  %v679 = vadd.f32 0.0, %v678
  %v680 = vpop.f32.mrb[0].mxu0
  %681 = vmatprep.mubr.f32.mxu0 0.0
  %682 = vmatmul.mubr.f32.gmra.mrb[0].mxu0 %v441
  %v683 = vpop.f32.mrb[0].mxu0
  %v684 = vadd.f32 0.0, %v683
  %v685 = vpop.f32.mrb[0].mxu0
  %686 = vmatprep.mubr.f32.mxu0 0.0
  %687 = vmatmul.mubr.f32.gmra.mrb[0].mxu0 %v444
  %v688 = vpop.f32.mrb[0].mxu0
  %v689 = vadd.f32 0.0, %v688
  %v690 = vpop.f32.mrb[0].mxu0
  %691 = vdwg.mxu0
  %v692 = vmax.f32 %v513, 0.0
  %v693 = vmax.f32 %v515, 0.0
  %v694 = vmax.f32 %v596, 0.0
  %v695 = vmax.f32 %v598, 0.0
  %v696 = vmax.f32 %v679, 0.0
  %v697 = vmax.f32 %v519, 0.0
  %v698 = vmax.f32 %v521, 0.0
  %v699 = vmax.f32 %v602, 0.0
  %v700 = vmax.f32 %v604, 0.0
  %v701 = vmax.f32 %v684, 0.0
  %v702 = vmax.f32 %v525, 0.0
  %v703 = vmax.f32 %v527, 0.0
  %v704 = vmax.f32 %v608, 0.0
  %v705 = vmax.f32 %v610, 0.0
  %v706 = vmax.f32 %v689, 0.0
  %v707 = vld [vmem:[%s2] sm:$0x7]
  %v708 = vlaneseq
  %v709 = vand.u32 %v708, 127
  %v711 = vlaneseq
  %v712 = vshrl.u32 %v711, 7
  %v713 = vsub.s32 0, %v712
  %v714 = vrot.slane %v707, %v713
  %v715 = vlaneseq
  %v716 = vshrl.u32 %v715, 7
  %v717 = vsub.s32 1, %v716
  %v718 = vrot.slane %v707, %v717
  %v719 = vlaneseq
  %v720 = vshrl.u32 %v719, 7
  %v721 = vsub.s32 2, %v720
  %v722 = vrot.slane %v707, %v721
  %v726 = vmul.f32 %v692, %v714
  %v727 = vmul.f32 %v693, %v718
  %v728 = vmul.f32 %v694, %v722
  %v729 = vmul.f32 %v697, %v714
  %v730 = vmul.f32 %v698, %v718
  %v731 = vmul.f32 %v699, %v722
  %v732 = vmul.f32 %v702, %v714
  %v733 = vmul.f32 %v703, %v718
  %v734 = vmul.f32 %v704, %v722
  %vm735 = vcmp.eq.s32.totalorder %v709, 0
  %v736 = vadd.f32 %v726, %v727
  %v737 = vsel %vm27, %v728, 0.0
  %v738 = vadd.f32 %v736, %v737
  %739 = vadd.xlane.f32.xlu0 %v738
  %v740 = vpop.xlane.xlu0 %739
  %v741 = vadd.f32 %v729, %v730
  %v742 = vsel %vm27, %v731, 0.0
  %v743 = vadd.f32 %v741, %v742
  %744 = vadd.xlane.f32.xlu0 %v743
  %v745 = vpop.xlane.xlu0 %744
  %vm746 = vcmask 1043456
  %v747 = vsel %vm746, %v732, 0.0
  %v748 = vsel %vm746, %v733, 0.0
  %v749 = vadd.f32 %v747, %v748
  %vm750 = vcmask 257024
  %v751 = vsel %vm750, %v734, 0.0
  %v752 = vadd.f32 %v749, %v751
  %753 = vadd.xlane.f32.xlu0 %v752
  %v754 = vpop.xlane.xlu0 %753
  %v755 = vsel %vm735, %v740, 0.0
  %v756 = vsel %vm735, %v745, 0.0
  %v757 = vsel %vm735, %v754, 0.0
  %v758 = vmul.f32 %v726, %v726
  %v759 = vmul.f32 %v727, %v727
  %v760 = vmul.f32 %v728, %v728
  %v761 = vmul.f32 %v729, %v729
  %v762 = vmul.f32 %v730, %v730
  %v763 = vmul.f32 %v731, %v731
  %v764 = vmul.f32 %v732, %v732
  %v765 = vmul.f32 %v733, %v733
  %v766 = vmul.f32 %v734, %v734
  %v767 = vadd.f32 %v758, %v759
  %v768 = vsel %vm27, %v760, 0.0
  %v769 = vadd.f32 %v767, %v768
  %770 = vadd.xlane.f32.xlu0 %v769
  %v771 = vpop.xlane.xlu0 %770
  %v772 = vadd.f32 %v761, %v762
  %v773 = vsel %vm27, %v763, 0.0
  %v774 = vadd.f32 %v772, %v773
  %775 = vadd.xlane.f32.xlu0 %v774
  %v776 = vpop.xlane.xlu0 %775
  %v777 = vsel %vm746, %v764, 0.0
  %v778 = vsel %vm746, %v765, 0.0
  %v779 = vadd.f32 %v777, %v778
  %v780 = vsel %vm750, %v766, 0.0
  %v781 = vadd.f32 %v779, %v780
  %782 = vadd.xlane.f32.xlu0 %v781
  %v783 = vpop.xlane.xlu0 %782
  %v784 = vsel %vm735, %v771, 0.0
  %v785 = vsel %vm735, %v776, 0.0
  %v786 = vsel %vm735, %v783, 0.0
  %787 = vrot.lane.b32.xlu0 %v714, 32
  %v788 = vpop.permute.xlu0 %787
  %789 = vrot.lane.b32.xlu0 %v718, 32
  %v790 = vpop.permute.xlu0 %789
  %791 = vrot.lane.b32.xlu0 %v722, 32
  %v792 = vpop.permute.xlu0 %791
  %v793 = vsel %vm27, %v788, %v790
  %v794 = vsel %vm27, %v790, %v792
  %v798 = vmul.f32 %v694, %v788
  %v799 = vmul.f32 %v695, %v793
  %v800 = vmul.f32 %v696, %v794
  %v801 = vmul.f32 %v699, %v788
  %v802 = vmul.f32 %v700, %v793
  %v803 = vmul.f32 %v701, %v794
  %v804 = vmul.f32 %v704, %v788
  %v805 = vmul.f32 %v705, %v793
  %v806 = vmul.f32 %v706, %v794
  %vm807 = vcmp.eq.s32.totalorder %v709, 1
  %817 = vrot.lane.b32.xlu0 %v798, 96
  %v818 = vpop.permute.xlu0 %817
  %819 = vrot.lane.b32.xlu0 %v799, 96
  %v820 = vpop.permute.xlu0 %819
  %821 = vrot.lane.b32.xlu0 %v800, 96
  %v822 = vpop.permute.xlu0 %821
  %823 = vrot.lane.b32.xlu0 %v801, 96
  %v824 = vpop.permute.xlu0 %823
  %825 = vrot.lane.b32.xlu0 %v802, 96
  %v826 = vpop.permute.xlu0 %825
  %827 = vrot.lane.b32.xlu0 %v803, 96
  %v828 = vpop.permute.xlu0 %827
  %829 = vrot.lane.b32.xlu0 %v804, 96
  %v830 = vpop.permute.xlu0 %829
  %831 = vrot.lane.b32.xlu0 %v805, 96
  %v832 = vpop.permute.xlu0 %831
  %833 = vrot.lane.b32.xlu0 %v806, 96
  %v834 = vpop.permute.xlu0 %833
  %vm835 = vcmask 785408
  %v836 = vsel %vm835, %v818, %v820
  %v837 = vsel %vm835, %v820, %v822
  %v838 = vsel %vm835, %v824, %v826
  %v839 = vsel %vm835, %v826, %v828
  %v840 = vsel %vm835, %v830, %v832
  %v841 = vsel %vm835, %v832, %v834
  %v851 = vadd.f32 %v836, %v837
  %v852 = vsel %vm27, %v822, 0.0
  %v853 = vadd.f32 %v851, %v852
  %854 = vadd.xlane.f32.xlu0 %v853
  %v855 = vpop.xlane.xlu0 %854
  %v856 = vadd.f32 %v838, %v839
  %v857 = vsel %vm27, %v828, 0.0
  %v858 = vadd.f32 %v856, %v857
  %859 = vadd.xlane.f32.xlu0 %v858
  %v860 = vpop.xlane.xlu0 %859
  %v861 = vsel %vm746, %v840, 0.0
  %v862 = vsel %vm746, %v841, 0.0
  %v863 = vadd.f32 %v861, %v862
  %v864 = vsel %vm750, %v834, 0.0
  %v865 = vadd.f32 %v863, %v864
  %866 = vadd.xlane.f32.xlu0 %v865
  %v867 = vpop.xlane.xlu0 %866
  %v868 = vsel %vm807, %v855, %v755
  %v869 = vsel %vm807, %v860, %v756
  %v870 = vsel %vm807, %v867, %v757
  %v871 = vmul.f32 %v798, %v798
  %v872 = vmul.f32 %v799, %v799
  %v873 = vmul.f32 %v800, %v800
  %v874 = vmul.f32 %v801, %v801
  %v875 = vmul.f32 %v802, %v802
  %v876 = vmul.f32 %v803, %v803
  %v877 = vmul.f32 %v804, %v804
  %v878 = vmul.f32 %v805, %v805
  %v879 = vmul.f32 %v806, %v806
  %889 = vrot.lane.b32.xlu0 %v871, 96
  %v890 = vpop.permute.xlu0 %889
  %891 = vrot.lane.b32.xlu0 %v872, 96
  %v892 = vpop.permute.xlu0 %891
  %893 = vrot.lane.b32.xlu0 %v873, 96
  %v894 = vpop.permute.xlu0 %893
  %895 = vrot.lane.b32.xlu0 %v874, 96
  %v896 = vpop.permute.xlu0 %895
  %897 = vrot.lane.b32.xlu0 %v875, 96
  %v898 = vpop.permute.xlu0 %897
  %899 = vrot.lane.b32.xlu0 %v876, 96
  %v900 = vpop.permute.xlu0 %899
  %901 = vrot.lane.b32.xlu0 %v877, 96
  %v902 = vpop.permute.xlu0 %901
  %903 = vrot.lane.b32.xlu0 %v878, 96
  %v904 = vpop.permute.xlu0 %903
  %905 = vrot.lane.b32.xlu0 %v879, 96
  %v906 = vpop.permute.xlu0 %905
  %v907 = vsel %vm835, %v890, %v892
  %v908 = vsel %vm835, %v892, %v894
  %v909 = vsel %vm835, %v896, %v898
  %v910 = vsel %vm835, %v898, %v900
  %v911 = vsel %vm835, %v902, %v904
  %v912 = vsel %vm835, %v904, %v906
  %v922 = vadd.f32 %v907, %v908
  %v923 = vsel %vm27, %v894, 0.0
  %v924 = vadd.f32 %v922, %v923
  %925 = vadd.xlane.f32.xlu0 %v924
  %v926 = vpop.xlane.xlu0 %925
  %v927 = vadd.f32 %v909, %v910
  %v928 = vsel %vm27, %v900, 0.0
  %v929 = vadd.f32 %v927, %v928
  %930 = vadd.xlane.f32.xlu0 %v929
  %v931 = vpop.xlane.xlu0 %930
  %v932 = vsel %vm746, %v911, 0.0
  %v933 = vsel %vm746, %v912, 0.0
  %v934 = vadd.f32 %v932, %v933
  %v935 = vsel %vm750, %v906, 0.0
  %v936 = vadd.f32 %v934, %v935
  %937 = vadd.xlane.f32.xlu0 %v936
  %v938 = vpop.xlane.xlu0 %937
  %v939 = vsel %vm807, %v926, %v784
  %v940 = vsel %vm807, %v931, %v785
  %v941 = vsel %vm807, %v938, %v786
  %v942 = vld [vmem:[%s4] sm:$0xff]
  %v943 = vld [vmem:[%s4 + $0x8] sm:$0x3]
  %vm944 = vcmask 162816
  %v946 = vsel %vm944, %v942, 0
  %v949 = vsel %vm944, %v943, 0
  %v952 = vsel %vm746, %v870, 0
  %954 = vmatprep.subr.mxu0 0.0
  %955 = vmatpush1.msra.mxu0 %v868
  %956 = vmatprep.subr.mxu0 0.0
  %957 = vmatpush1.msra.mxu0 %v869
  %958 = vmatprep.subr.mxu0 0.0
  %959 = vmatpush1.msra.mxu0 %v952
  %960 = vmatprep.subr.mxu0 0.0
  %961 = vmatpush1.msra.mxu0 0.0
  %962 = vmatprep.subr.mxu0 0.0
  %963 = vmatpush1.msra.mxu0 0.0
  %964 = vmatprep.subr.mxu0 0.0
  %965 = vmatpush1.msra.mxu0 0.0
  %966 = vmatprep.subr.mxu0 0.0
  %967 = vmatpush1.msra.mxu0 0.0
  %968 = vmatprep.subr.mxu0 0.0
  %969 = vmatpush1.msra.mxu0 0.0
  %970 = vmatprep.subr.mxu0 0.0
  %971 = vmatpush1.msra.mxu0 0.0
  %972 = vmatprep.subr.mxu0 0.0
  %973 = vmatpush1.msra.mxu0 0.0
  %974 = vmatprep.subr.mxu0 0.0
  %975 = vmatpush1.msra.mxu0 0.0
  %976 = vmatprep.subr.mxu0 0.0
  %977 = vmatpush1.msra.mxu0 0.0
  %978 = vmatprep.subr.mxu0 0.0
  %979 = vmatpush1.msra.mxu0 0.0
  %980 = vmatprep.subr.mxu0 0.0
  %981 = vmatpush1.msra.mxu0 0.0
  %982 = vmatprep.subr.mxu0 0.0
  %983 = vmatpush1.msra.mxu0 0.0
  %984 = vmatprep.subr.mxu0 0.0
  %985 = vmatpush1.msra.mxu0 0.0
  %986 = vmatprep.subr.mxu0 0.0
  %987 = vmatpush1.msra.mxu0 0.0
  %988 = vmatprep.subr.mxu0 0.0
  %989 = vmatpush1.msra.mxu0 0.0
  %990 = vmatprep.subr.mxu0 0.0
  %991 = vmatpush1.msra.mxu0 0.0
  %992 = vmatprep.subr.mxu0 0.0
  %993 = vmatpush1.msra.mxu0 0.0
  %994 = vmatprep.subr.mxu0 0.0
  %995 = vmatpush1.msra.mxu0 0.0
  %996 = vmatprep.subr.mxu0 0.0
  %997 = vmatpush1.msra.mxu0 0.0
  %998 = vmatprep.subr.mxu0 0.0
  %999 = vmatpush1.msra.mxu0 0.0
  %1000 = vmatprep.subr.mxu0 0.0
  %1001 = vmatpush1.msra.mxu0 0.0
  %1002 = vmatprep.subr.mxu0 0.0
  %1003 = vmatpush1.msra.mxu0 0.0
  %1004 = vmatprep.subr.mxu0 0.0
  %1005 = vmatpush1.msra.mxu0 0.0
  %1006 = vmatprep.subr.mxu0 0.0
  %1007 = vmatpush1.msra.mxu0 0.0
  %1008 = vmatprep.subr.mxu0 0.0
  %1009 = vmatpush1.msra.mxu0 0.0
  %1010 = vmatprep.subr.mxu0 0.0
  %1011 = vmatpush1.msra.mxu0 0.0
  %1012 = vmatprep.subr.mxu0 0.0
  %1013 = vmatpush1.msra.mxu0 0.0
  %1014 = vmatprep.subr.mxu0 0.0
  %1015 = vmatpush1.msra.mxu0 0.0
  %1016 = vmatprep.subr.mxu0 0.0
  %1017 = vmatpush1.msra.mxu0 0.0
  %1018 = vmatprep.mubr.f32.mxu0 0.0
  %1019 = vmatmul.mubr.f32.gmra.mrb[0].mxu0 %v946
  %v1020 = vpop.f32.mrb[0].mxu0
  %v1021 = vadd.f32 0.0, %v1020
  %v1022 = vpop.f32.mrb[0].mxu0
  %1023 = vmatprep.mubr.f32.mxu0 0.0
  %1024 = vmatmul.mubr.f32.gmra.mrb[0].mxu0 %v949
  %v1025 = vpop.f32.mrb[0].mxu0
  %v1026 = vadd.f32 0.0, %v1025
  %v1027 = vpop.f32.mrb[0].mxu0
  %1028 = vdwg.mxu0
  %v1029 = vmul.f32 %v1021, 0.001953125
  %v1030 = vmul.f32 %v1026, 0.001953125
  %v1032 = vsel %vm746, %v941, 0
  %1034 = vmatprep.subr.mxu0 0.0
  %1035 = vmatpush1.msra.mxu0 %v939
  %1036 = vmatprep.subr.mxu0 0.0
  %1037 = vmatpush1.msra.mxu0 %v940
  %1038 = vmatprep.subr.mxu0 0.0
  %1039 = vmatpush1.msra.mxu0 %v1032
  %1040 = vmatprep.subr.mxu0 0.0
  %1041 = vmatpush1.msra.mxu0 0.0
  %1042 = vmatprep.subr.mxu0 0.0
  %1043 = vmatpush1.msra.mxu0 0.0
  %1044 = vmatprep.subr.mxu0 0.0
  %1045 = vmatpush1.msra.mxu0 0.0
  %1046 = vmatprep.subr.mxu0 0.0
  %1047 = vmatpush1.msra.mxu0 0.0
  %1048 = vmatprep.subr.mxu0 0.0
  %1049 = vmatpush1.msra.mxu0 0.0
  %1050 = vmatprep.subr.mxu0 0.0
  %1051 = vmatpush1.msra.mxu0 0.0
  %1052 = vmatprep.subr.mxu0 0.0
  %1053 = vmatpush1.msra.mxu0 0.0
  %1054 = vmatprep.subr.mxu0 0.0
  %1055 = vmatpush1.msra.mxu0 0.0
  %1056 = vmatprep.subr.mxu0 0.0
  %1057 = vmatpush1.msra.mxu0 0.0
  %1058 = vmatprep.subr.mxu0 0.0
  %1059 = vmatpush1.msra.mxu0 0.0
  %1060 = vmatprep.subr.mxu0 0.0
  %1061 = vmatpush1.msra.mxu0 0.0
  %1062 = vmatprep.subr.mxu0 0.0
  %1063 = vmatpush1.msra.mxu0 0.0
  %1064 = vmatprep.subr.mxu0 0.0
  %1065 = vmatpush1.msra.mxu0 0.0
  %1066 = vmatprep.subr.mxu0 0.0
  %1067 = vmatpush1.msra.mxu0 0.0
  %1068 = vmatprep.subr.mxu0 0.0
  %1069 = vmatpush1.msra.mxu0 0.0
  %1070 = vmatprep.subr.mxu0 0.0
  %1071 = vmatpush1.msra.mxu0 0.0
  %1072 = vmatprep.subr.mxu0 0.0
  %1073 = vmatpush1.msra.mxu0 0.0
  %1074 = vmatprep.subr.mxu0 0.0
  %1075 = vmatpush1.msra.mxu0 0.0
  %1076 = vmatprep.subr.mxu0 0.0
  %1077 = vmatpush1.msra.mxu0 0.0
  %1078 = vmatprep.subr.mxu0 0.0
  %1079 = vmatpush1.msra.mxu0 0.0
  %1080 = vmatprep.subr.mxu0 0.0
  %1081 = vmatpush1.msra.mxu0 0.0
  %1082 = vmatprep.subr.mxu0 0.0
  %1083 = vmatpush1.msra.mxu0 0.0
  %1084 = vmatprep.subr.mxu0 0.0
  %1085 = vmatpush1.msra.mxu0 0.0
  %1086 = vmatprep.subr.mxu0 0.0
  %1087 = vmatpush1.msra.mxu0 0.0
  %1088 = vmatprep.subr.mxu0 0.0
  %1089 = vmatpush1.msra.mxu0 0.0
  %1090 = vmatprep.subr.mxu0 0.0
  %1091 = vmatpush1.msra.mxu0 0.0
  %1092 = vmatprep.subr.mxu0 0.0
  %1093 = vmatpush1.msra.mxu0 0.0
  %1094 = vmatprep.subr.mxu0 0.0
  %1095 = vmatpush1.msra.mxu0 0.0
  %1096 = vmatprep.subr.mxu0 0.0
  %1097 = vmatpush1.msra.mxu0 0.0
  %1098 = vmatprep.mubr.f32.mxu0 0.0
  %1099 = vmatmul.mubr.f32.gmra.mrb[0].mxu0 %v946
  %v1100 = vpop.f32.mrb[0].mxu0
  %v1101 = vadd.f32 0.0, %v1100
  %v1102 = vpop.f32.mrb[0].mxu0
  %1103 = vmatprep.mubr.f32.mxu0 0.0
  %1104 = vmatmul.mubr.f32.gmra.mrb[0].mxu0 %v949
  %v1105 = vpop.f32.mrb[0].mxu0
  %v1106 = vadd.f32 0.0, %v1105
  %v1107 = vpop.f32.mrb[0].mxu0
  %1108 = vdwg.mxu0
  %v1109 = vmul.f32 %v1101, 0.001953125
  %v1110 = vmul.f32 %v1106, 0.001953125
  %v1111 = vmul.f32 %v1029, %v1029
  %v1112 = vmul.f32 %v1030, %v1030
  %v1113 = vsub.f32 %v1109, %v1111
  %v1114 = vsub.f32 %v1110, %v1112
  %v1115 = vmax.f32 %v1113, 0.0
  %v1116 = vmax.f32 %v1114, 0.0
  %v1117 = vadd.f32 %v1115, 1e-05
  %v1118 = vadd.f32 %v1116, 1e-05
  %v1119 = vrsqrt.pop %v1117
  %v1120 = vrsqrt.pop %v1118
  %vm1121 = vcmask 15360
  %1122 = vst.msk [vmem:[%s6] sm:$0xff] %vm1121, %v1029
  %vm1123 = vcmask 9216
  %1124 = vst.msk [vmem:[%s6 + $0x8] sm:$0x3] %vm1123, %v1030
  %v1125 = vld [vmem:[%s3] sm:$0xff]
  %v1126 = vld [vmem:[%s3 + $0x8] sm:$0xff]
  %v1127 = vld [vmem:[%s3 + $0x10] sm:$0xf]
  %vm1128 = vcmask 80896
  %v1130 = vsel %vm1128, %v1125, 0
  %v1133 = vsel %vm1128, %v1126, 0
  %v1136 = vsel %vm1128, %v1127, 0
  %vm1138 = vcmask 1041408
  %v1140 = vsel %vm1138, %v1030, 0
  %1142 = vmatprep.subr.mxu0 0.0
  %1143 = vmatpush1.msra.mxu0 %v1029
  %1144 = vmatprep.subr.mxu0 0.0
  %1145 = vmatpush1.msra.mxu0 %v1140
  %1146 = vmatprep.subr.mxu0 0.0
  %1147 = vmatpush1.msra.mxu0 0.0
  %1148 = vmatprep.subr.mxu0 0.0
  %1149 = vmatpush1.msra.mxu0 0.0
  %1150 = vmatprep.subr.mxu0 0.0
  %1151 = vmatpush1.msra.mxu0 0.0
  %1152 = vmatprep.subr.mxu0 0.0
  %1153 = vmatpush1.msra.mxu0 0.0
  %1154 = vmatprep.subr.mxu0 0.0
  %1155 = vmatpush1.msra.mxu0 0.0
  %1156 = vmatprep.subr.mxu0 0.0
  %1157 = vmatpush1.msra.mxu0 0.0
  %1158 = vmatprep.subr.mxu0 0.0
  %1159 = vmatpush1.msra.mxu0 0.0
  %1160 = vmatprep.subr.mxu0 0.0
  %1161 = vmatpush1.msra.mxu0 0.0
  %1162 = vmatprep.subr.mxu0 0.0
  %1163 = vmatpush1.msra.mxu0 0.0
  %1164 = vmatprep.subr.mxu0 0.0
  %1165 = vmatpush1.msra.mxu0 0.0
  %1166 = vmatprep.subr.mxu0 0.0
  %1167 = vmatpush1.msra.mxu0 0.0
  %1168 = vmatprep.subr.mxu0 0.0
  %1169 = vmatpush1.msra.mxu0 0.0
  %1170 = vmatprep.subr.mxu0 0.0
  %1171 = vmatpush1.msra.mxu0 0.0
  %1172 = vmatprep.subr.mxu0 0.0
  %1173 = vmatpush1.msra.mxu0 0.0
  %1174 = vmatprep.subr.mxu0 0.0
  %1175 = vmatpush1.msra.mxu0 0.0
  %1176 = vmatprep.subr.mxu0 0.0
  %1177 = vmatpush1.msra.mxu0 0.0
  %1178 = vmatprep.subr.mxu0 0.0
  %1179 = vmatpush1.msra.mxu0 0.0
  %1180 = vmatprep.subr.mxu0 0.0
  %1181 = vmatpush1.msra.mxu0 0.0
  %1182 = vmatprep.subr.mxu0 0.0
  %1183 = vmatpush1.msra.mxu0 0.0
  %1184 = vmatprep.subr.mxu0 0.0
  %1185 = vmatpush1.msra.mxu0 0.0
  %1186 = vmatprep.subr.mxu0 0.0
  %1187 = vmatpush1.msra.mxu0 0.0
  %1188 = vmatprep.subr.mxu0 0.0
  %1189 = vmatpush1.msra.mxu0 0.0
  %1190 = vmatprep.subr.mxu0 0.0
  %1191 = vmatpush1.msra.mxu0 0.0
  %1192 = vmatprep.subr.mxu0 0.0
  %1193 = vmatpush1.msra.mxu0 0.0
  %1194 = vmatprep.subr.mxu0 0.0
  %1195 = vmatpush1.msra.mxu0 0.0
  %1196 = vmatprep.subr.mxu0 0.0
  %1197 = vmatpush1.msra.mxu0 0.0
  %1198 = vmatprep.subr.mxu0 0.0
  %1199 = vmatpush1.msra.mxu0 0.0
  %1200 = vmatprep.subr.mxu0 0.0
  %1201 = vmatpush1.msra.mxu0 0.0
  %1202 = vmatprep.subr.mxu0 0.0
  %1203 = vmatpush1.msra.mxu0 0.0
  %1204 = vmatprep.subr.mxu0 0.0
  %1205 = vmatpush1.msra.mxu0 0.0
  %1206 = vmatprep.mubr.f32.mxu0 0.0
  %1207 = vmatmul.mubr.f32.gmra.mrb[0].mxu0 %v1130
  %v1208 = vpop.f32.mrb[0].mxu0
  %v1209 = vadd.f32 0.0, %v1208
  %v1210 = vpop.f32.mrb[0].mxu0
  %1211 = vmatprep.mubr.f32.mxu0 0.0
  %1212 = vmatmul.mubr.f32.gmra.mrb[0].mxu0 %v1133
  %v1213 = vpop.f32.mrb[0].mxu0
  %v1214 = vadd.f32 0.0, %v1213
  %v1215 = vpop.f32.mrb[0].mxu0
  %1216 = vmatprep.mubr.f32.mxu0 0.0
  %1217 = vmatmul.mubr.f32.gmra.mrb[0].mxu0 %v1136
  %v1218 = vpop.f32.mrb[0].mxu0
  %v1219 = vadd.f32 0.0, %v1218
  %v1220 = vpop.f32.mrb[0].mxu0
  %1221 = vdwg.mxu0
  %v1223 = vsel %vm1138, %v1120, 0
  %1225 = vmatprep.subr.mxu0 0.0
  %1226 = vmatpush1.msra.mxu0 %v1119
  %1227 = vmatprep.subr.mxu0 0.0
  %1228 = vmatpush1.msra.mxu0 %v1223
  %1229 = vmatprep.subr.mxu0 0.0
  %1230 = vmatpush1.msra.mxu0 0.0
  %1231 = vmatprep.subr.mxu0 0.0
  %1232 = vmatpush1.msra.mxu0 0.0
  %1233 = vmatprep.subr.mxu0 0.0
  %1234 = vmatpush1.msra.mxu0 0.0
  %1235 = vmatprep.subr.mxu0 0.0
  %1236 = vmatpush1.msra.mxu0 0.0
  %1237 = vmatprep.subr.mxu0 0.0
  %1238 = vmatpush1.msra.mxu0 0.0
  %1239 = vmatprep.subr.mxu0 0.0
  %1240 = vmatpush1.msra.mxu0 0.0
  %1241 = vmatprep.subr.mxu0 0.0
  %1242 = vmatpush1.msra.mxu0 0.0
  %1243 = vmatprep.subr.mxu0 0.0
  %1244 = vmatpush1.msra.mxu0 0.0
  %1245 = vmatprep.subr.mxu0 0.0
  %1246 = vmatpush1.msra.mxu0 0.0
  %1247 = vmatprep.subr.mxu0 0.0
  %1248 = vmatpush1.msra.mxu0 0.0
  %1249 = vmatprep.subr.mxu0 0.0
  %1250 = vmatpush1.msra.mxu0 0.0
  %1251 = vmatprep.subr.mxu0 0.0
  %1252 = vmatpush1.msra.mxu0 0.0
  %1253 = vmatprep.subr.mxu0 0.0
  %1254 = vmatpush1.msra.mxu0 0.0
  %1255 = vmatprep.subr.mxu0 0.0
  %1256 = vmatpush1.msra.mxu0 0.0
  %1257 = vmatprep.subr.mxu0 0.0
  %1258 = vmatpush1.msra.mxu0 0.0
  %1259 = vmatprep.subr.mxu0 0.0
  %1260 = vmatpush1.msra.mxu0 0.0
  %1261 = vmatprep.subr.mxu0 0.0
  %1262 = vmatpush1.msra.mxu0 0.0
  %1263 = vmatprep.subr.mxu0 0.0
  %1264 = vmatpush1.msra.mxu0 0.0
  %1265 = vmatprep.subr.mxu0 0.0
  %1266 = vmatpush1.msra.mxu0 0.0
  %1267 = vmatprep.subr.mxu0 0.0
  %1268 = vmatpush1.msra.mxu0 0.0
  %1269 = vmatprep.subr.mxu0 0.0
  %1270 = vmatpush1.msra.mxu0 0.0
  %1271 = vmatprep.subr.mxu0 0.0
  %1272 = vmatpush1.msra.mxu0 0.0
  %1273 = vmatprep.subr.mxu0 0.0
  %1274 = vmatpush1.msra.mxu0 0.0
  %1275 = vmatprep.subr.mxu0 0.0
  %1276 = vmatpush1.msra.mxu0 0.0
  %1277 = vmatprep.subr.mxu0 0.0
  %1278 = vmatpush1.msra.mxu0 0.0
  %1279 = vmatprep.subr.mxu0 0.0
  %1280 = vmatpush1.msra.mxu0 0.0
  %1281 = vmatprep.subr.mxu0 0.0
  %1282 = vmatpush1.msra.mxu0 0.0
  %1283 = vmatprep.subr.mxu0 0.0
  %1284 = vmatpush1.msra.mxu0 0.0
  %1285 = vmatprep.subr.mxu0 0.0
  %1286 = vmatpush1.msra.mxu0 0.0
  %1287 = vmatprep.subr.mxu0 0.0
  %1288 = vmatpush1.msra.mxu0 0.0
  %1289 = vmatprep.mubr.f32.mxu0 0.0
  %1290 = vmatmul.mubr.f32.gmra.mrb[0].mxu0 %v1130
  %v1291 = vpop.f32.mrb[0].mxu0
  %v1292 = vadd.f32 0.0, %v1291
  %v1293 = vpop.f32.mrb[0].mxu0
  %1294 = vmatprep.mubr.f32.mxu0 0.0
  %1295 = vmatmul.mubr.f32.gmra.mrb[0].mxu0 %v1133
  %v1296 = vpop.f32.mrb[0].mxu0
  %v1297 = vadd.f32 0.0, %v1296
  %v1298 = vpop.f32.mrb[0].mxu0
  %1299 = vmatprep.mubr.f32.mxu0 0.0
  %1300 = vmatmul.mubr.f32.gmra.mrb[0].mxu0 %v1136
  %v1301 = vpop.f32.mrb[0].mxu0
  %v1302 = vadd.f32 0.0, %v1301
  %v1303 = vpop.f32.mrb[0].mxu0
  %1304 = vdwg.mxu0
  %1306 = vset.pattern.permute.xlu0 0
  %1307 = vperm.xlu0 %1306, %v1209
  %v1308 = vpop.permute.xlu0 %1307
  %1311 = vset.pattern.permute.xlu0 0
  %1312 = vperm.xlu0 %1311, %v1214
  %v1313 = vpop.permute.xlu0 %1312
  %1316 = vset.pattern.permute.xlu0 0
  %1317 = vperm.xlu0 %1316, %v1219
  %v1318 = vpop.permute.xlu0 %1317
  %v1320 = vsub.f32 %v692, %v1308
  %v1321 = vsub.f32 %v693, %v1308
  %v1322 = vsub.f32 %v694, %v1308
  %v1323 = vsub.f32 %v697, %v1313
  %v1324 = vsub.f32 %v698, %v1313
  %v1325 = vsub.f32 %v699, %v1313
  %v1326 = vsub.f32 %v702, %v1318
  %v1327 = vsub.f32 %v703, %v1318
  %v1328 = vsub.f32 %v704, %v1318
  %1330 = vset.pattern.permute.xlu0 0
  %1331 = vperm.xlu0 %1330, %v1292
  %v1332 = vpop.permute.xlu0 %1331
  %1335 = vset.pattern.permute.xlu0 0
  %1336 = vperm.xlu0 %1335, %v1297
  %v1337 = vpop.permute.xlu0 %1336
  %1340 = vset.pattern.permute.xlu0 0
  %1341 = vperm.xlu0 %1340, %v1302
  %v1342 = vpop.permute.xlu0 %1341
  %v1344 = vmul.f32 %v1320, %v1332
  %v1345 = vmul.f32 %v1321, %v1332
  %v1346 = vmul.f32 %v1322, %v1332
  %v1347 = vmul.f32 %v1323, %v1337
  %v1348 = vmul.f32 %v1324, %v1337
  %v1349 = vmul.f32 %v1325, %v1337
  %v1350 = vmul.f32 %v1326, %v1342
  %v1351 = vmul.f32 %v1327, %v1342
  %v1352 = vmul.f32 %v1328, %v1342
  %1353 = vst [vmem:[%s5] sm:$0xff] %v1344
  %1354 = vst [vmem:[%s5 + $0x8] sm:$0xff] %v1345
  %1355 = vst.msk [vmem:[%s5 + $0x10] sm:$0xff] %vm27, %v1346
  %1356 = vst [vmem:[%s5 + $0x18] sm:$0xff] %v1347
  %1357 = vst [vmem:[%s5 + $0x20] sm:$0xff] %v1348
  %1358 = vst.msk [vmem:[%s5 + $0x28] sm:$0xff] %vm27, %v1349
  %1359 = vst [vmem:[%s5 + $0x30] sm:$0xf] %v1350
  %1360 = vst [vmem:[%s5 + $0x38] sm:$0xf] %v1351
  %1361 = vst.msk [vmem:[%s5 + $0x40] sm:$0xf] %vm750, %v1352
  %1362 = vset.pattern.permute.xlu0 1
  %1363 = vperm.xlu0 %1362, %v1209
  %v1364 = vpop.permute.xlu0 %1363
  %1366 = vset.pattern.permute.xlu0 1
  %1367 = vperm.xlu0 %1366, %v1214
  %v1368 = vpop.permute.xlu0 %1367
  %1370 = vset.pattern.permute.xlu0 1
  %1371 = vperm.xlu0 %1370, %v1219
  %v1372 = vpop.permute.xlu0 %1371
  %v1374 = vsub.f32 %v694, %v1364
  %v1375 = vsub.f32 %v695, %v1364
  %v1376 = vsub.f32 %v696, %v1364
  %v1377 = vsub.f32 %v699, %v1368
  %v1378 = vsub.f32 %v700, %v1368
  %v1379 = vsub.f32 %v701, %v1368
  %v1380 = vsub.f32 %v704, %v1372
  %v1381 = vsub.f32 %v705, %v1372
  %v1382 = vsub.f32 %v706, %v1372
  %1383 = vset.pattern.permute.xlu0 1
  %1384 = vperm.xlu0 %1383, %v1292
  %v1385 = vpop.permute.xlu0 %1384
  %1387 = vset.pattern.permute.xlu0 1
  %1388 = vperm.xlu0 %1387, %v1297
  %v1389 = vpop.permute.xlu0 %1388
  %1391 = vset.pattern.permute.xlu0 1
  %1392 = vperm.xlu0 %1391, %v1302
  %v1393 = vpop.permute.xlu0 %1392
  %v1395 = vmul.f32 %v1374, %v1385
  %v1396 = vmul.f32 %v1375, %v1385
  %v1397 = vmul.f32 %v1376, %v1385
  %v1398 = vmul.f32 %v1377, %v1389
  %v1399 = vmul.f32 %v1378, %v1389
  %v1400 = vmul.f32 %v1379, %v1389
  %v1401 = vmul.f32 %v1380, %v1393
  %v1402 = vmul.f32 %v1381, %v1393
  %v1403 = vmul.f32 %v1382, %v1393
  %1413 = vrot.lane.b32.xlu0 %v1395, 96
  %v1414 = vpop.permute.xlu0 %1413
  %1415 = vrot.lane.b32.xlu0 %v1396, 96
  %v1416 = vpop.permute.xlu0 %1415
  %1417 = vrot.lane.b32.xlu0 %v1397, 96
  %v1418 = vpop.permute.xlu0 %1417
  %1419 = vrot.lane.b32.xlu0 %v1398, 96
  %v1420 = vpop.permute.xlu0 %1419
  %1421 = vrot.lane.b32.xlu0 %v1399, 96
  %v1422 = vpop.permute.xlu0 %1421
  %1423 = vrot.lane.b32.xlu0 %v1400, 96
  %v1424 = vpop.permute.xlu0 %1423
  %1425 = vrot.lane.b32.xlu0 %v1401, 96
  %v1426 = vpop.permute.xlu0 %1425
  %1427 = vrot.lane.b32.xlu0 %v1402, 96
  %v1428 = vpop.permute.xlu0 %1427
  %1429 = vrot.lane.b32.xlu0 %v1403, 96
  %v1430 = vpop.permute.xlu0 %1429
  %v1431 = vsel %vm835, %v1414, %v1416
  %v1432 = vsel %vm835, %v1416, %v1418
  %v1433 = vsel %vm835, %v1420, %v1422
  %v1434 = vsel %vm835, %v1422, %v1424
  %v1435 = vsel %vm835, %v1426, %v1428
  %v1436 = vsel %vm835, %v1428, %v1430
  %s1446 = scalar_lea.vmem %s5, 72
  %1447 = vst [vmem:[%s1446] sm:$0xff] %v1431
  %1448 = vst [vmem:[%s1446 + $0x8] sm:$0xff] %v1432
  %1449 = vst.msk [vmem:[%s1446 + $0x10] sm:$0xff] %vm27, %v1418
  %1450 = vst [vmem:[%s1446 + $0x18] sm:$0xff] %v1433
  %1451 = vst [vmem:[%s1446 + $0x20] sm:$0xff] %v1434
  %1452 = vst.msk [vmem:[%s1446 + $0x28] sm:$0xff] %vm27, %v1424
  %1453 = vst [vmem:[%s1446 + $0x30] sm:$0xf] %v1435
  %1454 = vst [vmem:[%s1446 + $0x38] sm:$0xf] %v1436
  %1455 = vst.msk [vmem:[%s1446 + $0x40] sm:$0xf] %vm750, %v1430
  // Predicated region
  $region22: #{forward.1} parent=0 // pred_check
    _
  $region23: #{forward.1} parent=0 // pred_check_branch
    %1457 = sbr.rel (0) target = $region25
  $region24: #{forward.1} parent=0 // pred_region
    _
  $region25: #{forward.1} parent=0 // pred_fallthru
    _
  // Predicated region
  $region26: #{forward.1} parent=0 // pred_check
    _
  $region27: #{forward.1} parent=0 // pred_check_branch
    %1459 = sbr.rel (0) target = $region29
  $region28: #{forward.1} parent=0 // pred_region
    _
  $region29: #{forward.1} parent=0 // pred_fallthru
    _
  // Predicated region
  $region30: #{forward.1} parent=0 // pred_check
    _
  $region31: #{forward.1} parent=0 // pred_check_branch
    %1461 = sbr.rel (0) target = $region33
  $region32: #{forward.1} parent=0 // pred_region
    _
  $region33: #{forward.1} parent=0 // pred_fallthru
    _
  // Predicated region
  $region34: #{forward.1} parent=0 // pred_check
    _
  $region35: #{forward.1} parent=0 // pred_check_branch
    %1463 = sbr.rel (0) target = $region37
  $region36: #{forward.1} parent=0 // pred_region
    _
  $region37: #{forward.1} parent=0 // pred_fallthru
    _

</llo_original>
